<compile_context>
chip_gen: v6e
topology: v6e:2x2x1
jax: 0.10.0
libtpu: 0.0.40
codegen_flags: <defaults>
</compile_context>

<pallas_src>
import jax
import jax.numpy as jnp
from jax.experimental import pallas as pl
from jax.experimental.pallas import tpu as pltpu


# ---------------------------------------------------------------------------
# Pallas kernels
# ---------------------------------------------------------------------------
def conv_gemm_relu_kernel(p_ref, w_ref, b_ref, o_ref):
    # o = relu(patches @ W + b): bf16 inputs, f32 MXU accumulation, bf16 out.
    acc = jnp.dot(p_ref[...], w_ref[...], preferred_element_type=jnp.float32)
    o_ref[...] = jnp.maximum(acc + b_ref[...], 0.0).astype(o_ref.dtype)


def heads_kernel(x_ref, w1_ref, b1_ref, wa_ref, ba_ref, act_ref, acc_ref):
    # K-tiled: acc(B,FC) += x_blk @ W1_blk ; finalize: relu(+b1) -> action head.
    k = pl.program_id(0)

    @pl.when(k == 0)
    def _init():
        acc_ref[...] = jnp.zeros_like(acc_ref)

    acc_ref[...] += jnp.dot(x_ref[...], w1_ref[...],
                            preferred_element_type=jnp.float32)

    @pl.when(k == pl.num_programs(0) - 1)
    def _finalize():
        h = jnp.maximum(acc_ref[...] + b1_ref[...], 0.0)
        act = jnp.dot(h.astype(wa_ref.dtype), wa_ref[...],
                      preferred_element_type=jnp.float32)
        act_ref[...] = (act + ba_ref[...]).astype(act_ref.dtype)


# ---------------------------------------------------------------------------
# Glue + pallas_call wrappers
# ---------------------------------------------------------------------------
def im2col_3d(x):
    # x: (B, D, H, W, C); kernel 3x3x3, stride 1, padding 1.
    # Columns are in (kd, kh, kw, c) order -> NO per-forward transpose of the
    # 27x-expanded activation; the conv weight is reordered once instead.
    B, D, H, W, C = x.shape
    xp = jnp.pad(x, ((0, 0), (1, 1), (1, 1), (1, 1), (0, 0)))
    cols = [xp[:, kd:kd + D, kh:kh + H, kw:kw + W, :]
            for kd in range(3) for kh in range(3) for kw in range(3)]
    patches = jnp.stack(cols, axis=-2)            # (B, D, H, W, 27, C)
    return patches.reshape(B * D * H * W, 27 * C)


def conv3d_relu(x_bf16, w_gemm, b_gemm, *, tile_m=512):
    # w_gemm: (27*C, 64) bf16 (already reordered), b_gemm: (1, 64) f32.
    B, D, H, W, C = x_bf16.shape
    N, K1 = B * D * H * W, 27 * C
    patches = im2col_3d(x_bf16)                   # (N, K1) bf16
    tm = min(tile_m, N)

    out = pl.pallas_call(
        conv_gemm_relu_kernel,
        out_shape=jax.ShapeDtypeStruct((N, 64), jnp.bfloat16),
        grid=(pl.cdiv(N, tm),),
        in_specs=[
            pl.BlockSpec((tm, K1), lambda i: (i, 0)),   # row-tiled, pipelined
            pl.BlockSpec((K1, 64), lambda i: (0, 0)),   # resident weight
            pl.BlockSpec((1, 64), lambda i: (0, 0)),    # resident bias
        ],
        out_specs=pl.BlockSpec((tm, 64), lambda i: (i, 0)),
        compiler_params=pltpu.CompilerParams(
            dimension_semantics=("parallel",),          # v7x: shard across 2 TCs
            vmem_limit_bytes=32 * 1024 * 1024),
    )(patches, w_gemm, b_gemm)

    # Rows are already (b, d, h, w)-major with channels last, and fc1_w rows
    # were permuted once to match -> plain reshape, no NCDHW transpose.
    return out.reshape(B, D * H * W * 64)


def _pick_k_tile(F, max_tile=2048):
    if F <= max_tile:
        return F
    for t in (2048, 1024, 512, 256, 128):
        if t <= max_tile and F % t == 0:
            return t
    return F  # fall back to a single (un-tiled) block


def mlp_heads(feat, w1, b1, wa, ba):
    # feat: (B, F) bf16, w1: (F, FC) bf16, wa: (FC, A) bf16, biases f32.
    B, F = feat.shape
    FC = w1.shape[1]
    A = wa.shape[1]
    tk = _pick_k_tile(F)

    return pl.pallas_call(
        heads_kernel,
        out_shape=jax.ShapeDtypeStruct((B, A), jnp.float32),
        grid=(F // tk,),
        in_specs=[
            pl.BlockSpec((B, tk), lambda k: (0, k)),    # activation K-slice
            pl.BlockSpec((tk, FC), lambda k: (k, 0)),   # fc1 weight K-slice
            pl.BlockSpec((1, FC), lambda k: (0, 0)),
            pl.BlockSpec((FC, A), lambda k: (0, 0)),
            pl.BlockSpec((1, A), lambda k: (0, 0)),
        ],
        out_specs=pl.BlockSpec((B, A), lambda k: (0, 0)),
        scratch_shapes=[pltpu.VMEM((B, FC), jnp.float32)],
        compiler_params=pltpu.CompilerParams(
            dimension_semantics=("arbitrary",),         # reduction axis
            vmem_limit_bytes=32 * 1024 * 1024),
    )(feat, w1, b1, wa, ba)


def prepare_params(raw, spatial):
    """One-time weight reorders + bf16 casts (all layout cost moved off the
    per-forward activation path onto the weights)."""
    D, H, W = spatial
    conv_w = raw["conv_w"]                         # (64, C, 3, 3, 3) torch OIDHW
    C = conv_w.shape[1]
    FC = raw["fc1_w"].shape[1]

    # Conv GEMM weight: columns of im2col are (kd, kh, kw, c)-ordered.
    w_conv = jnp.transpose(conv_w, (0, 2, 3, 4, 1)).reshape(64, 27 * C).T

    # fc_1 weight rows: torch flattens a (B, 64, D, H, W) tensor (row index
    # c*DHW + d*HW + h*W + w); we feed the NDHWC-flattened conv output
    # (row index ((d*H+h)*W+w)*64 + c), so permute the rows once.
    fc1_w = raw["fc1_w"].reshape(64, D, H, W, FC)
    fc1_w = jnp.transpose(fc1_w, (1, 2, 3, 0, 4)).reshape(64 * D * H * W, FC)

    return {
        "conv_w": w_conv.astype(jnp.bfloat16),
        "conv_b": raw["conv_b"].reshape(1, 64).astype(jnp.float32),
        "fc1_w": fc1_w.astype(jnp.bfloat16),
        "fc1_b": raw["fc1_b"].reshape(1, FC).astype(jnp.float32),
        "act_w": raw["act_w"].astype(jnp.bfloat16),
        "act_b": raw["act_b"].reshape(1, -1).astype(jnp.float32),
    }


@jax.jit
def forward(obs, params):
    # obs: (B, D, H, W, C)  ==  input_dict['obs'] (pre-permute layout)
    x = conv3d_relu(obs.astype(jnp.bfloat16), params["conv_w"], params["conv_b"])
    return mlp_heads(x, params["fc1_w"], params["fc1_b"],
                     params["act_w"], params["act_b"])


# Pure-JAX f32 reference (sanity check only), consumes the raw torch-layout params.
def reference(obs, raw):
    x = jnp.transpose(obs, (0, 4, 1, 2, 3)).astype(jnp.float32)     # NCDHW
    y = jax.lax.conv_general_dilated(
        x, raw["conv_w"], window_strides=(1, 1, 1),
        padding=((1, 1), (1, 1), (1, 1)),
        dimension_numbers=("NCDHW", "OIDHW", "NCDHW"))
    y = jax.nn.relu(y + raw["conv_b"].reshape(1, 64, 1, 1, 1))
    y = y.reshape(y.shape[0], -1)
    h = jax.nn.relu(y @ raw["fc1_w"] + raw["fc1_b"])
    return h @ raw["act_w"] + raw["act_b"]


if __name__ == "__main__":
    # Small shapes consistent with the module: obs = (B, D, H, W, C)
    B, D, H, W, C = 2, 4, 4, 4, 4
    FC_SIZE, NUM_OUTPUTS = 128, 8
    PRE_FC = 64 * D * H * W                       # 64 * obs[-4] * obs[-3] * obs[-2]

    key = jax.random.PRNGKey(0)
    ks = jax.random.split(key, 7)
    obs = jax.random.normal(ks[0], (B, D, H, W, C), dtype=jnp.float32)
    raw = {
        "conv_w": 0.05 * jax.random.normal(ks[1], (64, C, 3, 3, 3), jnp.float32),
        "conv_b": 0.05 * jax.random.normal(ks[2], (64,), jnp.float32),
        "fc1_w": 0.05 * jax.random.normal(ks[3], (PRE_FC, FC_SIZE), jnp.float32),
        "fc1_b": 0.05 * jax.random.normal(ks[4], (FC_SIZE,), jnp.float32),
        "act_w": 0.05 * jax.random.normal(ks[5], (FC_SIZE, NUM_OUTPUTS), jnp.float32),
        "act_b": 0.05 * jax.random.normal(ks[6], (NUM_OUTPUTS,), jnp.float32),
    }

    params = prepare_params(raw, (D, H, W))       # one-time weight reorder / cast

    action_out = jax.block_until_ready(forward(obs, params))
    assert action_out.shape == (B, NUM_OUTPUTS)

    ref = jax.block_until_ready(reference(obs, raw))
    max_err = float(jnp.max(jnp.abs(action_out - ref)))
    # bf16 MXU path vs f32 reference -> slightly looser tolerance.
    assert jnp.allclose(action_out, ref, rtol=2e-2, atol=2e-2), (
        f"mismatch vs reference, max abs err {max_err}")

    # TODO(synk): value_function() (value_branch on the cached fc_1 features) is not
    # part of forward(); it would be one extra (FC_SIZE, 1) GEMM in heads_kernel.
    print("KERNEL_OK")
</pallas_src>

<mosaic_0001>
module attributes {stable_mosaic.version = 11 : i64} {
  func.func @conv_gemm_relu_kernel(%arg0: i32, %arg1: memref<128x108xbf16, #tpu.memory_space<vmem>>, %arg2: memref<108x64xbf16, #tpu.memory_space<vmem>>, %arg3: memref<1x64xf32, #tpu.memory_space<vmem>>, %arg4: memref<128x64xbf16, #tpu.memory_space<vmem>>) attributes {dimension_semantics = [#tpu.dimension_semantics<parallel>], iteration_bounds = array<i64: 1>, scalar_prefetch = 0 : i64, scratch_operands = 0 : i64, tpu.core_type = #tpu.core_type<tc>, window_params = [{transform_indices = @transform_0, window_bounds = array<i64: 128, 108>}, {pipeline_mode = #tpu.pipeline_mode<synchronous>, transform_indices = @transform_1, window_bounds = array<i64: 108, 64>}, {pipeline_mode = #tpu.pipeline_mode<synchronous>, transform_indices = @transform_2, window_bounds = array<i64: 1, 64>}, {transform_indices = @transform_3, window_bounds = array<i64: 128, 64>}]} {
    %c0 = arith.constant 0 : index
    %c0_0 = arith.constant 0 : index
    %0 = vector.load %arg1[%c0, %c0_0] : memref<128x108xbf16, #tpu.memory_space<vmem>>, vector<128x108xbf16>
    %c0_1 = arith.constant 0 : index
    %c0_2 = arith.constant 0 : index
    %1 = vector.load %arg2[%c0_1, %c0_2] : memref<108x64xbf16, #tpu.memory_space<vmem>>, vector<108x64xbf16>
    %cst = arith.constant dense<0.000000e+00> : vector<128x64xf32>
    %2 = tpu.matmul %0, %1, %cst {dimension_numbers = #tpu.dot_dimension_numbers<[1], [0], [0], [1], [0, 0, 1, 1], [], []>} : vector<128x108xbf16>, vector<108x64xbf16>, vector<128x64xf32> -> vector<128x64xf32>
    %c0_3 = arith.constant 0 : index
    %c0_4 = arith.constant 0 : index
    %3 = vector.load %arg3[%c0_3, %c0_4] : memref<1x64xf32, #tpu.memory_space<vmem>>, vector<1x64xf32>
    %4 = vector.broadcast %3 : vector<1x64xf32> to vector<128x64xf32>
    %5 = arith.addf %2, %4 : vector<128x64xf32>
    %cst_5 = arith.constant 0.000000e+00 : f32
    %6 = vector.broadcast %cst_5 : f32 to vector<128x64xf32>
    %7 = arith.maximumf %5, %6 : vector<128x64xf32>
    %8 = arith.truncf %7 : vector<128x64xf32> to vector<128x64xbf16>
    %c0_6 = arith.constant 0 : index
    %c0_7 = arith.constant 0 : index
    %9 = vector.load %arg4[%c0_6, %c0_7] : memref<128x64xbf16, #tpu.memory_space<vmem>>, vector<128x64xbf16>
    tpu.vector_store %arg4[%c0_6, %c0_7], %8 {strides = array<i32>} : memref<128x64xbf16, #tpu.memory_space<vmem>>, vector<128x64xbf16>,
    return
  }
  func.func @transform_0(%arg0: i32) -> (i32, i32) {
    %c0_i32 = arith.constant 0 : i32
    %c0_i32_0 = arith.constant 0 : i32
    return %arg0, %c0_i32 : i32, i32
  }
  func.func @transform_1(%arg0: i32) -> (i32, i32) {
    %c0_i32 = arith.constant 0 : i32
    %c0_i32_0 = arith.constant 0 : i32
    %c0_i32_1 = arith.constant 0 : i32
    return %c0_i32, %c0_i32_0 : i32, i32
  }
  func.func @transform_2(%arg0: i32) -> (i32, i32) {
    %c0_i32 = arith.constant 0 : i32
    %c0_i32_0 = arith.constant 0 : i32
    %c0_i32_1 = arith.constant 0 : i32
    return %c0_i32, %c0_i32_0 : i32, i32
  }
  func.func @transform_3(%arg0: i32) -> (i32, i32) {
    %c0_i32 = arith.constant 0 : i32
    %c0_i32_0 = arith.constant 0 : i32
    return %arg0, %c0_i32 : i32, i32
  }
}

module attributes {stable_mosaic.version = 11 : i64} {
  func.func @heads_kernel(%arg0: i32, %arg1: memref<2x2048xbf16, #tpu.memory_space<vmem>>, %arg2: memref<2048x128xbf16, #tpu.memory_space<vmem>>, %arg3: memref<1x128xf32, #tpu.memory_space<vmem>>, %arg4: memref<128x8xbf16, #tpu.memory_space<vmem>>, %arg5: memref<1x8xf32, #tpu.memory_space<vmem>>, %arg6: memref<2x8xf32, #tpu.memory_space<vmem>>, %arg7: memref<2x128xf32, #tpu.memory_space<vmem>>) attributes {dimension_semantics = [#tpu.dimension_semantics<arbitrary>], iteration_bounds = array<i64: 2>, scalar_prefetch = 0 : i64, scratch_operands = 1 : i64, tpu.core_type = #tpu.core_type<tc>, window_params = [{transform_indices = @transform_0, window_bounds = array<i64: 2, 2048>}, {transform_indices = @transform_1, window_bounds = array<i64: 2048, 128>}, {pipeline_mode = #tpu.pipeline_mode<synchronous>, transform_indices = @transform_2, window_bounds = array<i64: 1, 128>}, {pipeline_mode = #tpu.pipeline_mode<synchronous>, transform_indices = @transform_3, window_bounds = array<i64: 128, 8>}, {pipeline_mode = #tpu.pipeline_mode<synchronous>, transform_indices = @transform_4, window_bounds = array<i64: 1, 8>}, {pipeline_mode = #tpu.pipeline_mode<synchronous>, transform_indices = @transform_5, window_bounds = array<i64: 2, 8>}]} {
    %c0_i32 = arith.constant 0 : i32
    %0 = arith.cmpi eq, %arg0, %c0_i32 : i32
    %1 = arith.extui %0 : i1 to i32
    %c0_i32_0 = arith.constant 0 : i32
    %2 = arith.cmpi ne, %1, %c0_i32_0 : i32
    scf.if %2 {
      %cst_9 = arith.constant 0.000000e+00 : f32
      %12 = vector.broadcast %cst_9 : f32 to vector<2x128xf32>
      %c0_10 = arith.constant 0 : index
      %c0_11 = arith.constant 0 : index
      %13 = vector.load %arg7[%c0_10, %c0_11] : memref<2x128xf32, #tpu.memory_space<vmem>>, vector<2x128xf32>
      tpu.vector_store %arg7[%c0_10, %c0_11], %12 {strides = array<i32>} : memref<2x128xf32, #tpu.memory_space<vmem>>, vector<2x128xf32>,
    } else {
    }
    %c0 = arith.constant 0 : index
    %c0_1 = arith.constant 0 : index
    %3 = vector.load %arg7[%c0, %c0_1] : memref<2x128xf32, #tpu.memory_space<vmem>>, vector<2x128xf32>
    %c0_2 = arith.constant 0 : index
    %c0_3 = arith.constant 0 : index
    %4 = vector.load %arg1[%c0_2, %c0_3] : memref<2x2048xbf16, #tpu.memory_space<vmem>>, vector<2x2048xbf16>
    %c0_4 = arith.constant 0 : index
    %c0_5 = arith.constant 0 : index
    %5 = vector.load %arg2[%c0_4, %c0_5] : memref<2048x128xbf16, #tpu.memory_space<vmem>>, vector<2048x128xbf16>
    %cst = arith.constant dense<0.000000e+00> : vector<2x128xf32>
    %6 = tpu.matmul %4, %5, %cst {dimension_numbers = #tpu.dot_dimension_numbers<[1], [0], [0], [1], [0, 0, 1, 1], [], []>} : vector<2x2048xbf16>, vector<2048x128xbf16>, vector<2x128xf32> -> vector<2x128xf32>
    %7 = arith.addf %3, %6 : vector<2x128xf32>
    %c0_6 = arith.constant 0 : index
    %c0_7 = arith.constant 0 : index
    %8 = vector.load %arg7[%c0_6, %c0_7] : memref<2x128xf32, #tpu.memory_space<vmem>>, vector<2x128xf32>
    tpu.vector_store %arg7[%c0_6, %c0_7], %7 {strides = array<i32>} : memref<2x128xf32, #tpu.memory_space<vmem>>, vector<2x128xf32>,
    %c1_i32 = arith.constant 1 : i32
    %9 = arith.cmpi eq, %arg0, %c1_i32 : i32
    %10 = arith.extui %9 : i1 to i32
    %c0_i32_8 = arith.constant 0 : i32
    %11 = arith.cmpi ne, %10, %c0_i32_8 : i32
    scf.if %11 {
      %c0_9 = arith.constant 0 : index
      %c0_10 = arith.constant 0 : index
      %12 = vector.load %arg7[%c0_9, %c0_10] : memref<2x128xf32, #tpu.memory_space<vmem>>, vector<2x128xf32>
      %c0_11 = arith.constant 0 : index
      %c0_12 = arith.constant 0 : index
      %13 = vector.load %arg3[%c0_11, %c0_12] : memref<1x128xf32, #tpu.memory_space<vmem>>, vector<1x128xf32>
      %14 = vector.broadcast %13 : vector<1x128xf32> to vector<2x128xf32>
      %15 = arith.addf %12, %14 : vector<2x128xf32>
      %cst_13 = arith.constant 0.000000e+00 : f32
      %16 = vector.broadcast %cst_13 : f32 to vector<2x128xf32>
      %17 = arith.maximumf %15, %16 : vector<2x128xf32>
      %18 = arith.truncf %17 : vector<2x128xf32> to vector<2x128xbf16>
      %c0_14 = arith.constant 0 : index
      %c0_15 = arith.constant 0 : index
      %19 = vector.load %arg4[%c0_14, %c0_15] : memref<128x8xbf16, #tpu.memory_space<vmem>>, vector<128x8xbf16>
      %cst_16 = arith.constant dense<0.000000e+00> : vector<2x8xf32>
      %20 = tpu.matmul %18, %19, %cst_16 {dimension_numbers = #tpu.dot_dimension_numbers<[1], [0], [0], [1], [0, 0, 1, 1], [], []>} : vector<2x128xbf16>, vector<128x8xbf16>, vector<2x8xf32> -> vector<2x8xf32>
      %c0_17 = arith.constant 0 : index
      %c0_18 = arith.constant 0 : index
      %21 = vector.load %arg5[%c0_17, %c0_18] : memref<1x8xf32, #tpu.memory_space<vmem>>, vector<1x8xf32>
      %22 = vector.broadcast %21 : vector<1x8xf32> to vector<2x8xf32>
      %23 = arith.addf %20, %22 : vector<2x8xf32>
      %c0_19 = arith.constant 0 : index
      %c0_20 = arith.constant 0 : index
      %24 = vector.load %arg6[%c0_19, %c0_20] : memref<2x8xf32, #tpu.memory_space<vmem>>, vector<2x8xf32>
      tpu.vector_store %arg6[%c0_19, %c0_20], %23 {strides = array<i32>} : memref<2x8xf32, #tpu.memory_space<vmem>>, vector<2x8xf32>,
    } else {
    }
    return
  }
  func.func @transform_0(%arg0: i32) -> (i32, i32) {
    %c0_i32 = arith.constant 0 : i32
    %c0_i32_0 = arith.constant 0 : i32
    return %c0_i32, %arg0 : i32, i32
  }
  func.func @transform_1(%arg0: i32) -> (i32, i32) {
    %c0_i32 = arith.constant 0 : i32
    %c0_i32_0 = arith.constant 0 : i32
    return %arg0, %c0_i32 : i32, i32
  }
  func.func @transform_2(%arg0: i32) -> (i32, i32) {
    %c0_i32 = arith.constant 0 : i32
    %c0_i32_0 = arith.constant 0 : i32
    %c0_i32_1 = arith.constant 0 : i32
    return %c0_i32, %c0_i32_0 : i32, i32
  }
  func.func @transform_3(%arg0: i32) -> (i32, i32) {
    %c0_i32 = arith.constant 0 : i32
    %c0_i32_0 = arith.constant 0 : i32
    %c0_i32_1 = arith.constant 0 : i32
    return %c0_i32, %c0_i32_0 : i32, i32
  }
  func.func @transform_4(%arg0: i32) -> (i32, i32) {
    %c0_i32 = arith.constant 0 : i32
    %c0_i32_0 = arith.constant 0 : i32
    %c0_i32_1 = arith.constant 0 : i32
    return %c0_i32, %c0_i32_0 : i32, i32
  }
  func.func @transform_5(%arg0: i32) -> (i32, i32) {
    %c0_i32 = arith.constant 0 : i32
    %c0_i32_0 = arith.constant 0 : i32
    %c0_i32_1 = arith.constant 0 : i32
    return %c0_i32, %c0_i32_0 : i32, i32
  }
}

</mosaic_0001>

<llo_original>
// kernel: forward.2
$region0: #{forward.2}
  #allocation0 [shape = 'u32[]', space=smem, size = 0x4, offset = 0x4, fixed_abs, tag = 'smem constant byte address 0x4 - core index']
  #allocation1 [shape = 'u32[144,128]{1,0:T(1,128)}', space=vmem, size = 0x12000, scoped, tag = 'internal scratch']
  %s0 = inlined_call_operand.vmem [shape: bf16[128,108], index: 0, kind: input, shape index: {}]
  %s1 = inlined_call_operand.vmem [shape: bf16[108,64], index: 1, kind: input, shape index: {}]
  %s2 = inlined_call_operand.vmem [shape: f32[1,64], index: 2, kind: input, shape index: {}]
  %s3 = inlined_call_operand.vmem [shape: bf16[128,64], index: 3, kind: output, shape index: {}]
  %s4 = sld [smem:[#allocation0]]
  $region22: #{forward.2} parent=0
    _
  %s6 = ssub.s32 1, %s4
  %s7 = scalar_select 0, %s6, %s4
  // Predicated region
  $region2: #{forward.2} parent=0 // pred_check
    _
  $region3: #{forward.2} parent=0 // pred_check_branch
    %9 = sbr.rel (0) target = $region5
  $region4: #{forward.2} parent=0 // pred_region
    _
  $region5: #{forward.2} parent=0 // pred_fallthru
    _
  // Predicated region
  $region6: #{forward.2} parent=0 // pred_check
    _
  $region7: #{forward.2} parent=0 // pred_check_branch
    %11 = sbr.rel (0) target = $region9
  $region8: #{forward.2} parent=0 // pred_region
    _
  $region9: #{forward.2} parent=0 // pred_fallthru
    _
  // Predicated region
  $region10: #{forward.2} parent=0 // pred_check
    _
  $region11: #{forward.2} parent=0 // pred_check_branch
    %13 = sbr.rel (0) target = $region13
  $region12: #{forward.2} parent=0 // pred_region
    _
  $region13: #{forward.2} parent=0 // pred_fallthru
    _
  %v15 = vld [vmem:[%s0] sm:$0xf]
  %v16 = vld [vmem:[%s0 + $0x4] sm:$0xf]
  %v17 = vld [vmem:[%s0 + $0x8] sm:$0xf]
  %v18 = vld [vmem:[%s0 + $0xc] sm:$0xf]
  %v19 = vld [vmem:[%s0 + $0x10] sm:$0xf]
  %v20 = vld [vmem:[%s0 + $0x14] sm:$0xf]
  %v21 = vld [vmem:[%s0 + $0x18] sm:$0xf]
  %v22 = vld [vmem:[%s0 + $0x1c] sm:$0xf]
  %v23 = vld [vmem:[%s0 + $0x20] sm:$0xf]
  %v24 = vld [vmem:[%s0 + $0x24] sm:$0xf]
  %v25 = vld [vmem:[%s0 + $0x28] sm:$0xf]
  %v26 = vld [vmem:[%s0 + $0x2c] sm:$0xf]
  %v27 = vld [vmem:[%s0 + $0x30] sm:$0xf]
  %v28 = vld [vmem:[%s0 + $0x34] sm:$0xf]
  %v29 = vld [vmem:[%s0 + $0x38] sm:$0xf]
  %v30 = vld [vmem:[%s0 + $0x3c] sm:$0xf]
  %v31 = vld [vmem:[%s1] sm:$0xf]
  %v32 = vld [vmem:[%s1 + $0x4] sm:$0xf]
  %v33 = vld [vmem:[%s1 + $0x8] sm:$0xf]
  %v34 = vld [vmem:[%s1 + $0xc] sm:$0xf]
  %v35 = vld [vmem:[%s1 + $0x10] sm:$0xf]
  %v36 = vld [vmem:[%s1 + $0x14] sm:$0xf]
  %v37 = vld [vmem:[%s1 + $0x18] sm:$0xf]
  %v38 = vld [vmem:[%s1 + $0x1c] sm:$0xf]
  %v39 = vld [vmem:[%s1 + $0x20] sm:$0xf]
  %v40 = vld [vmem:[%s1 + $0x24] sm:$0xf]
  %v41 = vld [vmem:[%s1 + $0x28] sm:$0xf]
  %v42 = vld [vmem:[%s1 + $0x2c] sm:$0xf]
  %v43 = vld [vmem:[%s1 + $0x30] sm:$0xf]
  %v44 = vld [vmem:[%s1 + $0x34] sm:$0x3]
  %v45 = vld [vmem:[%s2] sm:$0x1]
  %v47 = vlaneseq
  %v48 = vshrl.u32 %v47, 7
  %v49 = vsub.s32 0, %v48
  %v50 = vrot.slane %v45, %v49
  %v68 = vunpack.c.l.b16 %v15
  %v69 = vunpack.c.l.b16 %v16
  %v70 = vunpack.c.l.b16 %v17
  %v71 = vunpack.c.l.b16 %v18
  %v72 = vunpack.c.l.b16 %v19
  %v73 = vunpack.c.l.b16 %v20
  %v74 = vunpack.c.l.b16 %v21
  %v75 = vunpack.c.l.b16 %v22
  %v76 = vunpack.c.l.b16 %v23
  %v77 = vunpack.c.l.b16 %v24
  %v78 = vunpack.c.l.b16 %v25
  %v79 = vunpack.c.l.b16 %v26
  %v80 = vunpack.c.l.b16 %v27
  %v81 = vunpack.c.l.b16 %v28
  %v82 = vunpack.c.l.b16 %v29
  %v83 = vunpack.c.l.b16 %v30
  %v84 = vpack.c.b16 %v69, %v68
  %v85 = vpack.c.b16 %v71, %v70
  %v86 = vpack.c.b16 %v73, %v72
  %v87 = vpack.c.b16 %v75, %v74
  %v88 = vpack.c.b16 %v77, %v76
  %v89 = vpack.c.b16 %v79, %v78
  %v90 = vpack.c.b16 %v81, %v80
  %v91 = vpack.c.b16 %v83, %v82
  %v106 = vunpack.c.l.b16 %v31
  %v107 = vunpack.c.l.b16 %v32
  %v108 = vunpack.c.l.b16 %v33
  %v109 = vunpack.c.l.b16 %v34
  %v110 = vunpack.c.l.b16 %v35
  %v111 = vunpack.c.l.b16 %v36
  %v112 = vunpack.c.l.b16 %v37
  %v113 = vunpack.c.l.b16 %v38
  %v114 = vunpack.c.l.b16 %v39
  %v115 = vunpack.c.l.b16 %v40
  %v116 = vunpack.c.l.b16 %v41
  %v117 = vunpack.c.l.b16 %v42
  %v118 = vunpack.c.l.b16 %v43
  %v119 = vunpack.c.l.b16 %v44
  %v120 = vpack.c.b16 %v107, %v106
  %v121 = vpack.c.b16 %v109, %v108
  %v122 = vpack.c.b16 %v111, %v110
  %v123 = vpack.c.b16 %v113, %v112
  %v124 = vpack.c.b16 %v115, %v114
  %v125 = vpack.c.b16 %v117, %v116
  %v126 = vpack.c.b16 %v119, %v118
  %vm133 = vcmask 883712
  %v135 = vsel %vm133, %v84, 0
  %v138 = vsel %vm133, %v85, 0
  %v141 = vsel %vm133, %v86, 0
  %v144 = vsel %vm133, %v87, 0
  %v147 = vsel %vm133, %v88, 0
  %v150 = vsel %vm133, %v89, 0
  %v153 = vsel %vm133, %v90, 0
  %v156 = vsel %vm133, %v91, 0
  %vm158 = vcmask 1045504
  %v160 = vsel %vm158, %v126, 0
  %162 = vmatprep.subr.bf16.mxu0 0
  %163 = vmatpush1.bf16.msra.mxu0 0
  %164 = vmatprep.subr.bf16.mxu0 0
  %165 = vmatpush1.bf16.msra.mxu0 %v160
  %166 = vmatprep.subr.bf16.mxu0 0
  %167 = vmatpush1.bf16.msra.mxu0 %v125
  %168 = vmatprep.subr.bf16.mxu0 0
  %169 = vmatpush1.bf16.msra.mxu0 %v124
  %170 = vmatprep.subr.bf16.mxu0 0
  %171 = vmatpush1.bf16.msra.mxu0 %v123
  %172 = vmatprep.subr.bf16.mxu0 0
  %173 = vmatpush1.bf16.msra.mxu0 %v122
  %174 = vmatprep.subr.bf16.mxu0 0
  %175 = vmatpush1.bf16.msra.mxu0 %v121
  %176 = vmatprep.subr.bf16.mxu0 0
  %177 = vmatpush1.bf16.msra.mxu0 %v120
  %178 = vmatprep.subr.bf16.mxu0 0
  %179 = vmatpush2.bf16.msra.mxu0 0
  %180 = vmatprep.subr.bf16.mxu0 0
  %181 = vmatpush2.bf16.msra.mxu0 0
  %182 = vmatprep.subr.bf16.mxu0 0
  %183 = vmatpush2.bf16.msra.mxu0 0
  %184 = vmatprep.subr.bf16.mxu0 0
  %185 = vmatpush2.bf16.msra.mxu0 0
  %186 = vmatprep.subr.bf16.mxu0 0
  %187 = vmatpush2.bf16.msra.mxu0 0
  %188 = vmatprep.subr.bf16.mxu0 0
  %189 = vmatpush2.bf16.msra.mxu0 0
  %190 = vmatprep.subr.bf16.mxu0 0
  %191 = vmatpush2.bf16.msra.mxu0 0
  %192 = vmatprep.subr.bf16.mxu0 0
  %193 = vmatpush2.bf16.msra.mxu0 0
  %194 = vmatprep.mubr.bf16.mxu0 0
  %195 = vmatmul.mubr.bf16.gmra.mxu0 %v135
  %v196 = vpop.f32.mrf.mxu0
  %v197 = vadd.f32 %v50, %v196
  %v198 = vpop.f32.mrf.mxu0
  %v199 = vpop.f32.mrf.mxu0
  %v200 = vadd.f32 %v50, %v199
  %v201 = vpop.f32.mrf.mxu0
  %202 = vmatprep.mubr.bf16.mxu0 0
  %203 = vmatmul.mubr.bf16.gmra.mxu0 %v138
  %v204 = vpop.f32.mrf.mxu0
  %v205 = vadd.f32 %v50, %v204
  %v206 = vpop.f32.mrf.mxu0
  %v207 = vpop.f32.mrf.mxu0
  %v208 = vadd.f32 %v50, %v207
  %v209 = vpop.f32.mrf.mxu0
  %210 = vmatprep.mubr.bf16.mxu0 0
  %211 = vmatmul.mubr.bf16.gmra.mxu0 %v141
  %v212 = vpop.f32.mrf.mxu0
  %v213 = vadd.f32 %v50, %v212
  %v214 = vpop.f32.mrf.mxu0
  %v215 = vpop.f32.mrf.mxu0
  %v216 = vadd.f32 %v50, %v215
  %v217 = vpop.f32.mrf.mxu0
  %218 = vmatprep.mubr.bf16.mxu0 0
  %219 = vmatmul.mubr.bf16.gmra.mxu0 %v144
  %v220 = vpop.f32.mrf.mxu0
  %v221 = vadd.f32 %v50, %v220
  %v222 = vpop.f32.mrf.mxu0
  %v223 = vpop.f32.mrf.mxu0
  %v224 = vadd.f32 %v50, %v223
  %v225 = vpop.f32.mrf.mxu0
  %226 = vmatprep.mubr.bf16.mxu0 0
  %227 = vmatmul.mubr.bf16.gmra.mxu0 %v147
  %v228 = vpop.f32.mrf.mxu0
  %v229 = vadd.f32 %v50, %v228
  %v230 = vpop.f32.mrf.mxu0
  %v231 = vpop.f32.mrf.mxu0
  %v232 = vadd.f32 %v50, %v231
  %v233 = vpop.f32.mrf.mxu0
  %234 = vmatprep.mubr.bf16.mxu0 0
  %235 = vmatmul.mubr.bf16.gmra.mxu0 %v150
  %v236 = vpop.f32.mrf.mxu0
  %v237 = vadd.f32 %v50, %v236
  %v238 = vpop.f32.mrf.mxu0
  %v239 = vpop.f32.mrf.mxu0
  %v240 = vadd.f32 %v50, %v239
  %v241 = vpop.f32.mrf.mxu0
  %242 = vmatprep.mubr.bf16.mxu0 0
  %243 = vmatmul.mubr.bf16.gmra.mxu0 %v153
  %v244 = vpop.f32.mrf.mxu0
  %v245 = vadd.f32 %v50, %v244
  %v246 = vpop.f32.mrf.mxu0
  %v247 = vpop.f32.mrf.mxu0
  %v248 = vadd.f32 %v50, %v247
  %v249 = vpop.f32.mrf.mxu0
  %250 = vmatprep.mubr.bf16.mxu0 0
  %251 = vmatmul.mubr.bf16.gmra.mxu0 %v156
  %v252 = vpop.f32.mrf.mxu0
  %v253 = vadd.f32 %v50, %v252
  %v254 = vpop.f32.mrf.mxu0
  %v255 = vpop.f32.mrf.mxu0
  %v256 = vadd.f32 %v50, %v255
  %v257 = vpop.f32.mrf.mxu0
  %258 = vdwg.mxu0
  %v259 = vmax.f32 %v197, 0.0
  %v260 = vmax.f32 %v200, 0.0
  %v261 = vmax.f32 %v205, 0.0
  %v262 = vmax.f32 %v208, 0.0
  %v263 = vmax.f32 %v213, 0.0
  %v264 = vmax.f32 %v216, 0.0
  %v265 = vmax.f32 %v221, 0.0
  %v266 = vmax.f32 %v224, 0.0
  %v267 = vmax.f32 %v229, 0.0
  %v268 = vmax.f32 %v232, 0.0
  %v269 = vmax.f32 %v237, 0.0
  %v270 = vmax.f32 %v240, 0.0
  %v271 = vmax.f32 %v245, 0.0
  %v272 = vmax.f32 %v248, 0.0
  %v273 = vmax.f32 %v253, 0.0
  %v274 = vmax.f32 %v256, 0.0
  %v275 = vpack.c.bf16 %v260, %v259
  %v276 = vpack.c.bf16 %v262, %v261
  %v277 = vpack.c.bf16 %v264, %v263
  %v278 = vpack.c.bf16 %v266, %v265
  %v279 = vpack.c.bf16 %v268, %v267
  %v280 = vpack.c.bf16 %v270, %v269
  %v281 = vpack.c.bf16 %v272, %v271
  %v282 = vpack.c.bf16 %v274, %v273
  %v291 = vunpack.c.l.b16 %v275
  %v292 = vunpack.c.h.b16 %v275
  %v293 = vunpack.c.l.b16 %v276
  %v294 = vunpack.c.h.b16 %v276
  %v295 = vunpack.c.l.b16 %v277
  %v296 = vunpack.c.h.b16 %v277
  %v297 = vunpack.c.l.b16 %v278
  %v298 = vunpack.c.h.b16 %v278
  %v299 = vunpack.c.l.b16 %v279
  %v300 = vunpack.c.h.b16 %v279
  %v301 = vunpack.c.l.b16 %v280
  %v302 = vunpack.c.h.b16 %v280
  %v303 = vunpack.c.l.b16 %v281
  %v304 = vunpack.c.h.b16 %v281
  %v305 = vunpack.c.l.b16 %v282
  %v306 = vunpack.c.h.b16 %v282
  %v307 = vpack.c.b16 %v291, %v291
  %v308 = vpack.c.b16 %v292, %v292
  %v309 = vpack.c.b16 %v293, %v293
  %v310 = vpack.c.b16 %v294, %v294
  %v311 = vpack.c.b16 %v295, %v295
  %v312 = vpack.c.b16 %v296, %v296
  %v313 = vpack.c.b16 %v297, %v297
  %v314 = vpack.c.b16 %v298, %v298
  %v315 = vpack.c.b16 %v299, %v299
  %v316 = vpack.c.b16 %v300, %v300
  %v317 = vpack.c.b16 %v301, %v301
  %v318 = vpack.c.b16 %v302, %v302
  %v319 = vpack.c.b16 %v303, %v303
  %v320 = vpack.c.b16 %v304, %v304
  %v321 = vpack.c.b16 %v305, %v305
  %v322 = vpack.c.b16 %v306, %v306
  %vm339 = vcmask 519168
  %340 = vst.msk [vmem:[%s3] sm:$0xf] %vm339, %v307
  %341 = vst.msk [vmem:[%s3 + $0x4] sm:$0xf] %vm339, %v308
  %342 = vst.msk [vmem:[%s3 + $0x8] sm:$0xf] %vm339, %v309
  %343 = vst.msk [vmem:[%s3 + $0xc] sm:$0xf] %vm339, %v310
  %344 = vst.msk [vmem:[%s3 + $0x10] sm:$0xf] %vm339, %v311
  %345 = vst.msk [vmem:[%s3 + $0x14] sm:$0xf] %vm339, %v312
  %346 = vst.msk [vmem:[%s3 + $0x18] sm:$0xf] %vm339, %v313
  %347 = vst.msk [vmem:[%s3 + $0x1c] sm:$0xf] %vm339, %v314
  %348 = vst.msk [vmem:[%s3 + $0x20] sm:$0xf] %vm339, %v315
  %349 = vst.msk [vmem:[%s3 + $0x24] sm:$0xf] %vm339, %v316
  %350 = vst.msk [vmem:[%s3 + $0x28] sm:$0xf] %vm339, %v317
  %351 = vst.msk [vmem:[%s3 + $0x2c] sm:$0xf] %vm339, %v318
  %352 = vst.msk [vmem:[%s3 + $0x30] sm:$0xf] %vm339, %v319
  %353 = vst.msk [vmem:[%s3 + $0x34] sm:$0xf] %vm339, %v320
  %354 = vst.msk [vmem:[%s3 + $0x38] sm:$0xf] %vm339, %v321
  %355 = vst.msk [vmem:[%s3 + $0x3c] sm:$0xf] %vm339, %v322
  // Predicated region
  $region14: #{forward.2} parent=0 // pred_check
    _
  $region15: #{forward.2} parent=0 // pred_check_branch
    %357 = sbr.rel (0) target = $region17
  $region16: #{forward.2} parent=0 // pred_region
    _
  $region17: #{forward.2} parent=0 // pred_fallthru
    _
  // Predicated region
  $region18: #{forward.2} parent=0 // pred_check
    _
  $region19: #{forward.2} parent=0 // pred_check_branch
    %359 = sbr.rel (0) target = $region21
  $region20: #{forward.2} parent=0 // pred_region
    _
  $region21: #{forward.2} parent=0 // pred_fallthru
    _

// kernel: forward.3
$region0: #{forward.3}
  #allocation0 [shape = 'u32[]', space=smem, size = 0x4, offset = 0x4, fixed_abs, tag = 'smem constant byte address 0x4 - core index']
  #allocation1 [shape = 'u32[144,128]{1,0:T(1,128)}', space=vmem, size = 0x12000, scoped, tag = 'internal scratch']
  #allocation2 [shape = 'f32[2,128]{1,0:T(2,128)}', space=vmem, size = 0x400, scoped, tag = 'scratch operand']
  %s0 = inlined_call_operand.vmem [shape: bf16[2,4096], index: 0, kind: input, shape index: {}]
  %s1 = inlined_call_operand.vmem [shape: bf16[4096,128], index: 1, kind: input, shape index: {}]
  %s2 = inlined_call_operand.vmem [shape: f32[1,128], index: 2, kind: input, shape index: {}]
  %s3 = inlined_call_operand.vmem [shape: bf16[128,8], index: 3, kind: input, shape index: {}]
  %s4 = inlined_call_operand.vmem [shape: f32[1,8], index: 4, kind: input, shape index: {}]
  %s5 = inlined_call_operand.hbm [shape: f32[2,8], index: 5, kind: output, shape index: {}]
  %s6 = sld [smem:[#allocation0]]
  $region61: #{forward.3} parent=0
    _
  %s8 = ssub.s32 1, %s6
  %s9 = scalar_select 0, %s8, %s6
  $region1: #{forward.3} parent=0
    #allocation3 [shape = 'u8[1024]{0}', space=vmem, size = 0x400, scoped, tag = 'output window, operand 0, single buffered']
    #allocation4 [shape = 's32[2]{0}', space=sflag, size = 0x8, scoped, tag = 'scoped memory for forward.3']
    %10 = vsyncpa [#allocation4], 0
    loop: start=0, step=1, limit=4
    $region2: #{forward.3} parent=1 // loop_pre_header
      _
    $region3: #{forward.3} parent=1 // loop_header
      %s12 = sphi 0, %s16
      %p13 = scmp.ge.s32.totalorder %s12, 4
      %s22 = sphi 0, %s24
      %s25 = sphi 0, %s22
      %s26 = sphi 0, %s25
      %s42 = sphi 0, %s26
      %s48 = sphi 0, %s50
      %s51 = sphi 0, %s48
      %s52 = sphi 0, %s51
      %s68 = sphi 0, %s52
      %s72 = sphi 0, %s72
      %s74 = sphi 0, %s72
      %s75 = sphi 0, %s74
      %s89 = sphi 0, %s75
      %s93 = sphi 0, %s93
      %s95 = sphi 0, %s93
      %s96 = sphi 0, %s95
      %s110 = sphi 0, %s96
      %s114 = sphi 0, %s114
      %s116 = sphi 0, %s114
      %s117 = sphi 0, %s116
      %s131 = sphi 0, %s117
      %s135 = sphi 0, %s135
      %s137 = sphi 0, %s135
      %s138 = sphi 0, %s137
      %s152 = sphi 0, %s138
    $region4: #{forward.3} parent=1 // loop_header_branch
      %15 = sbr.rel (%p13) target = $region8
    $region5: #{forward.3} parent=1 // loop_body
      %s17 = ssub.s32 %s12, 1
      %s18 = ssub.s32 %s12, 2
      %s19 = sadd.s32 %s12, 1
      %s20 = ssub.s32 %s12, %s19
      %p21 = scmp.eq.s32.totalorder %s20, 0
      %s23 = sadd.s32 %s22, 1
      %s24 = scalar_select %p21, %s22, %s23
      %p27 = pneg %p21
      %p28 = scmp.eq.s32.totalorder %s12, 1
      %p29 = por %p27, %p28
      %p30 = scmp.ne.s32.totalorder %s22, %s25
      %p31 = scmp.eq.s32.totalorder %s12, 0
      %p32 = por %p30, %p31
      %p33 = scmp.ne.s32.totalorder %s22, %s25
      %p34 = scmp.eq.s32.totalorder %s17, 1
      %p35 = por %p33, %p34
      %p36 = scmp.ne.s32.totalorder %s25, %s26
      %p37 = scmp.eq.s32.totalorder %s17, 0
      %p38 = por %p36, %p37
      %p39 = scmp.ne.s32.totalorder %s25, %s26
      %p40 = scmp.eq.s32.totalorder %s18, 1
      %p41 = por %p39, %p40
      %p43 = scmp.ne.s32.totalorder %s26, %s42
      %p44 = scmp.eq.s32.totalorder %s18, 0
      %p45 = por %p43, %p44
      %s46 = ssub.s32 %s12, %s19
      %p47 = scmp.eq.s32.totalorder %s46, 0
      %s49 = sadd.s32 %s48, 1
      %s50 = scalar_select %p47, %s48, %s49
      %p53 = pneg %p47
      %p54 = scmp.eq.s32.totalorder %s12, 1
      %p55 = por %p53, %p54
      %p56 = scmp.ne.s32.totalorder %s48, %s51
      %p57 = scmp.eq.s32.totalorder %s12, 0
      %p58 = por %p56, %p57
      %p59 = scmp.ne.s32.totalorder %s48, %s51
      %p60 = scmp.eq.s32.totalorder %s17, 1
      %p61 = por %p59, %p60
      %p62 = scmp.ne.s32.totalorder %s51, %s52
      %p63 = scmp.eq.s32.totalorder %s17, 0
      %p64 = por %p62, %p63
      %p65 = scmp.ne.s32.totalorder %s51, %s52
      %p66 = scmp.eq.s32.totalorder %s18, 1
      %p67 = por %p65, %p66
      %p69 = scmp.ne.s32.totalorder %s52, %s68
      %p70 = scmp.eq.s32.totalorder %s18, 0
      %p71 = por %p69, %p70
      %s73 = sadd.s32 %s72, 1
      %p76 = scmp.eq.s32.totalorder %s12, 1
      %p77 = scmp.ne.s32.totalorder %s72, %s74
      %p78 = scmp.eq.s32.totalorder %s12, 0
      %p79 = por %p77, %p78
      %p80 = scmp.ne.s32.totalorder %s72, %s74
      %p81 = scmp.eq.s32.totalorder %s17, 1
      %p82 = por %p80, %p81
      %p83 = scmp.ne.s32.totalorder %s74, %s75
      %p84 = scmp.eq.s32.totalorder %s17, 0
      %p85 = por %p83, %p84
      %p86 = scmp.ne.s32.totalorder %s74, %s75
      %p87 = scmp.eq.s32.totalorder %s18, 1
      %p88 = por %p86, %p87
      %p90 = scmp.ne.s32.totalorder %s75, %s89
      %p91 = scmp.eq.s32.totalorder %s18, 0
      %p92 = por %p90, %p91
      %s94 = sadd.s32 %s93, 1
      %p97 = scmp.eq.s32.totalorder %s12, 1
      %p98 = scmp.ne.s32.totalorder %s93, %s95
      %p99 = scmp.eq.s32.totalorder %s12, 0
      %p100 = por %p98, %p99
      %p101 = scmp.ne.s32.totalorder %s93, %s95
      %p102 = scmp.eq.s32.totalorder %s17, 1
      %p103 = por %p101, %p102
      %p104 = scmp.ne.s32.totalorder %s95, %s96
      %p105 = scmp.eq.s32.totalorder %s17, 0
      %p106 = por %p104, %p105
      %p107 = scmp.ne.s32.totalorder %s95, %s96
      %p108 = scmp.eq.s32.totalorder %s18, 1
      %p109 = por %p107, %p108
      %p111 = scmp.ne.s32.totalorder %s96, %s110
      %p112 = scmp.eq.s32.totalorder %s18, 0
      %p113 = por %p111, %p112
      %s115 = sadd.s32 %s114, 1
      %p118 = scmp.eq.s32.totalorder %s12, 1
      %p119 = scmp.ne.s32.totalorder %s114, %s116
      %p120 = scmp.eq.s32.totalorder %s12, 0
      %p121 = por %p119, %p120
      %p122 = scmp.ne.s32.totalorder %s114, %s116
      %p123 = scmp.eq.s32.totalorder %s17, 1
      %p124 = por %p122, %p123
      %p125 = scmp.ne.s32.totalorder %s116, %s117
      %p126 = scmp.eq.s32.totalorder %s17, 0
      %p127 = por %p125, %p126
      %p128 = scmp.ne.s32.totalorder %s116, %s117
      %p129 = scmp.eq.s32.totalorder %s18, 1
      %p130 = por %p128, %p129
      %p132 = scmp.ne.s32.totalorder %s117, %s131
      %p133 = scmp.eq.s32.totalorder %s18, 0
      %p134 = por %p132, %p133
      %s136 = sadd.s32 %s135, 1
      %p139 = scmp.eq.s32.totalorder %s12, 1
      %p140 = scmp.ne.s32.totalorder %s135, %s137
      %p141 = scmp.eq.s32.totalorder %s12, 0
      %p142 = por %p140, %p141
      %p143 = scmp.ne.s32.totalorder %s135, %s137
      %p144 = scmp.eq.s32.totalorder %s17, 1
      %p145 = por %p143, %p144
      %p146 = scmp.ne.s32.totalorder %s137, %s138
      %p147 = scmp.eq.s32.totalorder %s17, 0
      %p148 = por %p146, %p147
      %p149 = scmp.ne.s32.totalorder %s137, %s138
      %p150 = scmp.eq.s32.totalorder %s18, 1
      %p151 = por %p149, %p150
      %p153 = scmp.ne.s32.totalorder %s138, %s152
      %p154 = scmp.eq.s32.totalorder %s18, 0
      %p155 = por %p153, %p154
      %p156 = scmp.le.s32.totalorder 1, %s12
      %p157 = scmp.lt.s32.totalorder %s12, 3
      %p158 = pnand %p156, %p157
      %p159 = pneg %p158
      // Predicated region
      $region9: #{forward.3} parent=5 // pred_check
        _
      $region10: #{forward.3} parent=5 // pred_check_branch
        %161 = sbr.rel (%p158) target = $region12
      $region11: #{forward.3} parent=5 // pred_region
        %s162 = ssub.s32 %s12, 1
        // Predicated region
        $region13: #{forward.3} parent=11 // pred_check
          %p163 = pneg %p85
        $region14: #{forward.3} parent=11 // pred_check_branch
          %165 = sbr.rel (%p163) target = $region16
        $region15: #{forward.3} parent=11 // pred_region
          _
        $region16: #{forward.3} parent=11 // pred_fallthru
          _
        // Predicated region
        $region17: #{forward.3} parent=11 // pred_check
          %p166 = pneg %p106
        $region18: #{forward.3} parent=11 // pred_check_branch
          %168 = sbr.rel (%p166) target = $region20
        $region19: #{forward.3} parent=11 // pred_region
          _
        $region20: #{forward.3} parent=11 // pred_fallthru
          _
        // Predicated region
        $region21: #{forward.3} parent=11 // pred_check
          %p169 = pneg %p127
        $region22: #{forward.3} parent=11 // pred_check_branch
          %171 = sbr.rel (%p169) target = $region24
        $region23: #{forward.3} parent=11 // pred_region
          _
        $region24: #{forward.3} parent=11 // pred_fallthru
          _
      $region12: #{forward.3} parent=5 // pred_fallthru
        _
      %p172 = scmp.lt.s32.totalorder %s12, 2
      // Predicated region
      $region25: #{forward.3} parent=5 // pred_check
        %p173 = pneg %p172
      $region26: #{forward.3} parent=5 // pred_check_branch
        %175 = sbr.rel (%p173) target = $region28
      $region27: #{forward.3} parent=5 // pred_region
        // Predicated region
        $region29: #{forward.3} parent=27 // pred_check
          %p176 = pneg %p32
        $region30: #{forward.3} parent=27 // pred_check_branch
          %178 = sbr.rel (%p176) target = $region32
        $region31: #{forward.3} parent=27 // pred_region
          %s179 = smul.u32 16, %s12
          %p180 = scmp.lt.s32.totalorder %s179, 31
          %s181 = scalar_select %p180, %s179, 31
          %s182 = scalar_lea.vmem %s0, %s181
          %s183 = smul.u32 16, %s12
        $region32: #{forward.3} parent=27 // pred_fallthru
          _
        // Predicated region
        $region33: #{forward.3} parent=27 // pred_check
          %p184 = pneg %p58
        $region34: #{forward.3} parent=27 // pred_check_branch
          %186 = sbr.rel (%p184) target = $region36
        $region35: #{forward.3} parent=27 // pred_region
          %s187 = smul.u32 256, %s12
          %p188 = scmp.lt.s32.totalorder %s187, 511
          %s189 = scalar_select %p188, %s187, 511
          %s190 = smul.addr %s189, 4
          %s191 = scalar_lea.vmem %s1, %s190
          %s192 = smul.u32 256, %s12
        $region36: #{forward.3} parent=27 // pred_fallthru
          _
      $region28: #{forward.3} parent=5 // pred_fallthru
        _
      %p193 = scmp.le.s32.totalorder 1, %s12
      %p194 = scmp.lt.s32.totalorder %s12, 3
      %p195 = pnand %p193, %p194
      %p196 = pneg %p195
      // Predicated region
      $region37: #{forward.3} parent=5 // pred_check
        _
      $region38: #{forward.3} parent=5 // pred_check_branch
        %198 = sbr.rel (%p195) target = $region40
      $region39: #{forward.3} parent=5 // pred_region
        %s199 = ssub.s32 %s12, 1
        %s200 = smul.u32 16, %s17
        %p201 = scmp.lt.s32.totalorder %s200, 31
        %s202 = scalar_select %p201, %s200, 31
        %s203 = scalar_lea.vmem %s0, %s202
        %p204 = pneg %p38
        %p205 = pneg %p35
        %s206 = smul.u32 256, %s17
        %p207 = scmp.lt.s32.totalorder %s206, 511
        %s208 = scalar_select %p207, %s206, 511
        %s209 = smul.addr %s208, 4
        %s210 = scalar_lea.vmem %s1, %s209
        %p211 = pneg %p64
        %p212 = pneg %p61
        %p213 = pneg %p85
        %p214 = pneg %p82
        %p215 = pneg %p106
        %p216 = pneg %p103
        %p217 = pneg %p127
        %p218 = pneg %p124
        %p219 = pneg %p148
        %p220 = pneg %p145
        %s221 = smul.u32 16, %s17
        %p222 = scmp.lt.s32.totalorder %s221, 31
        %s223 = scalar_select %p222, %s221, 31
        %s224 = scalar_lea.vmem %s0, %s223
        %s225 = smul.u32 16, %s17
        %s226 = smul.u32 256, %s17
        %p227 = scmp.lt.s32.totalorder %s226, 511
        %s228 = scalar_select %p227, %s226, 511
        %s229 = smul.addr %s228, 4
        %s230 = scalar_lea.vmem %s1, %s229
        %s231 = smul.u32 256, %s17
        %p233 = scmp.eq.s32.totalorder %s17, 0
        // Predicated region
        $region41: #{forward.3} parent=39 // pred_check
          %p234 = pneg %p233
        $region42: #{forward.3} parent=39 // pred_check_branch
          %236 = sbr.rel (%p234) target = $region44
        $region43: #{forward.3} parent=39 // pred_region
          %237 = vst [vmem:[#allocation2] sm:$0x3] 0.0
        $region44: #{forward.3} parent=39 // pred_fallthru
          _
        %v238 = vld [vmem:[#allocation2] sm:$0x3]
        %v239 = vld [vmem:[%s224] sm:$0xff]
        %v240 = vld [vmem:[%s224 + $0x8] sm:$0xff]
        %v241 = vld [vmem:[%s230] sm:$0xf]
        %v242 = vld [vmem:[%s230 + $0x4] sm:$0xf]
        %v243 = vld [vmem:[%s230 + $0x8] sm:$0xf]
        %v244 = vld [vmem:[%s230 + $0xc] sm:$0xf]
        %v245 = vld [vmem:[%s230 + $0x10] sm:$0xf]
        %v246 = vld [vmem:[%s230 + $0x14] sm:$0xf]
        %v247 = vld [vmem:[%s230 + $0x18] sm:$0xf]
        %v248 = vld [vmem:[%s230 + $0x1c] sm:$0xf]
        %v249 = vld [vmem:[%s230 + $0x20] sm:$0xf]
        %v250 = vld [vmem:[%s230 + $0x24] sm:$0xf]
        %v251 = vld [vmem:[%s230 + $0x28] sm:$0xf]
        %v252 = vld [vmem:[%s230 + $0x2c] sm:$0xf]
        %v253 = vld [vmem:[%s230 + $0x30] sm:$0xf]
        %v254 = vld [vmem:[%s230 + $0x34] sm:$0xf]
        %v255 = vld [vmem:[%s230 + $0x38] sm:$0xf]
        %v256 = vld [vmem:[%s230 + $0x3c] sm:$0xf]
        %v257 = vld [vmem:[%s230 + $0x40] sm:$0xf]
        %v258 = vld [vmem:[%s230 + $0x44] sm:$0xf]
        %v259 = vld [vmem:[%s230 + $0x48] sm:$0xf]
        %v260 = vld [vmem:[%s230 + $0x4c] sm:$0xf]
        %v261 = vld [vmem:[%s230 + $0x50] sm:$0xf]
        %v262 = vld [vmem:[%s230 + $0x54] sm:$0xf]
        %v263 = vld [vmem:[%s230 + $0x58] sm:$0xf]
        %v264 = vld [vmem:[%s230 + $0x5c] sm:$0xf]
        %v265 = vld [vmem:[%s230 + $0x60] sm:$0xf]
        %v266 = vld [vmem:[%s230 + $0x64] sm:$0xf]
        %v267 = vld [vmem:[%s230 + $0x68] sm:$0xf]
        %v268 = vld [vmem:[%s230 + $0x6c] sm:$0xf]
        %v269 = vld [vmem:[%s230 + $0x70] sm:$0xf]
        %v270 = vld [vmem:[%s230 + $0x74] sm:$0xf]
        %v271 = vld [vmem:[%s230 + $0x78] sm:$0xf]
        %v272 = vld [vmem:[%s230 + $0x7c] sm:$0xf]
        %v273 = vld [vmem:[%s230 + $0x80] sm:$0xf]
        %v274 = vld [vmem:[%s230 + $0x84] sm:$0xf]
        %v275 = vld [vmem:[%s230 + $0x88] sm:$0xf]
        %v276 = vld [vmem:[%s230 + $0x8c] sm:$0xf]
        %v277 = vld [vmem:[%s230 + $0x90] sm:$0xf]
        %v278 = vld [vmem:[%s230 + $0x94] sm:$0xf]
        %v279 = vld [vmem:[%s230 + $0x98] sm:$0xf]
        %v280 = vld [vmem:[%s230 + $0x9c] sm:$0xf]
        %v281 = vld [vmem:[%s230 + $0xa0] sm:$0xf]
        %v282 = vld [vmem:[%s230 + $0xa4] sm:$0xf]
        %v283 = vld [vmem:[%s230 + $0xa8] sm:$0xf]
        %v284 = vld [vmem:[%s230 + $0xac] sm:$0xf]
        %v285 = vld [vmem:[%s230 + $0xb0] sm:$0xf]
        %v286 = vld [vmem:[%s230 + $0xb4] sm:$0xf]
        %v287 = vld [vmem:[%s230 + $0xb8] sm:$0xf]
        %v288 = vld [vmem:[%s230 + $0xbc] sm:$0xf]
        %v289 = vld [vmem:[%s230 + $0xc0] sm:$0xf]
        %v290 = vld [vmem:[%s230 + $0xc4] sm:$0xf]
        %v291 = vld [vmem:[%s230 + $0xc8] sm:$0xf]
        %v292 = vld [vmem:[%s230 + $0xcc] sm:$0xf]
        %v293 = vld [vmem:[%s230 + $0xd0] sm:$0xf]
        %v294 = vld [vmem:[%s230 + $0xd4] sm:$0xf]
        %v295 = vld [vmem:[%s230 + $0xd8] sm:$0xf]
        %v296 = vld [vmem:[%s230 + $0xdc] sm:$0xf]
        %v297 = vld [vmem:[%s230 + $0xe0] sm:$0xf]
        %v298 = vld [vmem:[%s230 + $0xe4] sm:$0xf]
        %v299 = vld [vmem:[%s230 + $0xe8] sm:$0xf]
        %v300 = vld [vmem:[%s230 + $0xec] sm:$0xf]
        %v301 = vld [vmem:[%s230 + $0xf0] sm:$0xf]
        %v302 = vld [vmem:[%s230 + $0xf4] sm:$0xf]
        %v303 = vld [vmem:[%s230 + $0xf8] sm:$0xf]
        %v304 = vld [vmem:[%s230 + $0xfc] sm:$0xf]
        %v305 = vld [vmem:[%s230 + $0x100] sm:$0xf]
        %v306 = vld [vmem:[%s230 + $0x104] sm:$0xf]
        %v307 = vld [vmem:[%s230 + $0x108] sm:$0xf]
        %v308 = vld [vmem:[%s230 + $0x10c] sm:$0xf]
        %v309 = vld [vmem:[%s230 + $0x110] sm:$0xf]
        %v310 = vld [vmem:[%s230 + $0x114] sm:$0xf]
        %v311 = vld [vmem:[%s230 + $0x118] sm:$0xf]
        %v312 = vld [vmem:[%s230 + $0x11c] sm:$0xf]
        %v313 = vld [vmem:[%s230 + $0x120] sm:$0xf]
        %v314 = vld [vmem:[%s230 + $0x124] sm:$0xf]
        %v315 = vld [vmem:[%s230 + $0x128] sm:$0xf]
        %v316 = vld [vmem:[%s230 + $0x12c] sm:$0xf]
        %v317 = vld [vmem:[%s230 + $0x130] sm:$0xf]
        %v318 = vld [vmem:[%s230 + $0x134] sm:$0xf]
        %v319 = vld [vmem:[%s230 + $0x138] sm:$0xf]
        %v320 = vld [vmem:[%s230 + $0x13c] sm:$0xf]
        %v321 = vld [vmem:[%s230 + $0x140] sm:$0xf]
        %v322 = vld [vmem:[%s230 + $0x144] sm:$0xf]
        %v323 = vld [vmem:[%s230 + $0x148] sm:$0xf]
        %v324 = vld [vmem:[%s230 + $0x14c] sm:$0xf]
        %v325 = vld [vmem:[%s230 + $0x150] sm:$0xf]
        %v326 = vld [vmem:[%s230 + $0x154] sm:$0xf]
        %v327 = vld [vmem:[%s230 + $0x158] sm:$0xf]
        %v328 = vld [vmem:[%s230 + $0x15c] sm:$0xf]
        %v329 = vld [vmem:[%s230 + $0x160] sm:$0xf]
        %v330 = vld [vmem:[%s230 + $0x164] sm:$0xf]
        %v331 = vld [vmem:[%s230 + $0x168] sm:$0xf]
        %v332 = vld [vmem:[%s230 + $0x16c] sm:$0xf]
        %v333 = vld [vmem:[%s230 + $0x170] sm:$0xf]
        %v334 = vld [vmem:[%s230 + $0x174] sm:$0xf]
        %v335 = vld [vmem:[%s230 + $0x178] sm:$0xf]
        %v336 = vld [vmem:[%s230 + $0x17c] sm:$0xf]
        %v337 = vld [vmem:[%s230 + $0x180] sm:$0xf]
        %v338 = vld [vmem:[%s230 + $0x184] sm:$0xf]
        %v339 = vld [vmem:[%s230 + $0x188] sm:$0xf]
        %v340 = vld [vmem:[%s230 + $0x18c] sm:$0xf]
        %v341 = vld [vmem:[%s230 + $0x190] sm:$0xf]
        %v342 = vld [vmem:[%s230 + $0x194] sm:$0xf]
        %v343 = vld [vmem:[%s230 + $0x198] sm:$0xf]
        %v344 = vld [vmem:[%s230 + $0x19c] sm:$0xf]
        %v345 = vld [vmem:[%s230 + $0x1a0] sm:$0xf]
        %v346 = vld [vmem:[%s230 + $0x1a4] sm:$0xf]
        %v347 = vld [vmem:[%s230 + $0x1a8] sm:$0xf]
        %v348 = vld [vmem:[%s230 + $0x1ac] sm:$0xf]
        %v349 = vld [vmem:[%s230 + $0x1b0] sm:$0xf]
        %v350 = vld [vmem:[%s230 + $0x1b4] sm:$0xf]
        %v351 = vld [vmem:[%s230 + $0x1b8] sm:$0xf]
        %v352 = vld [vmem:[%s230 + $0x1bc] sm:$0xf]
        %v353 = vld [vmem:[%s230 + $0x1c0] sm:$0xf]
        %v354 = vld [vmem:[%s230 + $0x1c4] sm:$0xf]
        %v355 = vld [vmem:[%s230 + $0x1c8] sm:$0xf]
        %v356 = vld [vmem:[%s230 + $0x1cc] sm:$0xf]
        %v357 = vld [vmem:[%s230 + $0x1d0] sm:$0xf]
        %v358 = vld [vmem:[%s230 + $0x1d4] sm:$0xf]
        %v359 = vld [vmem:[%s230 + $0x1d8] sm:$0xf]
        %v360 = vld [vmem:[%s230 + $0x1dc] sm:$0xf]
        %v361 = vld [vmem:[%s230 + $0x1e0] sm:$0xf]
        %v362 = vld [vmem:[%s230 + $0x1e4] sm:$0xf]
        %v363 = vld [vmem:[%s230 + $0x1e8] sm:$0xf]
        %v364 = vld [vmem:[%s230 + $0x1ec] sm:$0xf]
        %v365 = vld [vmem:[%s230 + $0x1f0] sm:$0xf]
        %v366 = vld [vmem:[%s230 + $0x1f4] sm:$0xf]
        %v367 = vld [vmem:[%s230 + $0x1f8] sm:$0xf]
        %v368 = vld [vmem:[%s230 + $0x1fc] sm:$0xf]
        %v369 = vld [vmem:[%s230 + $0x200] sm:$0xf]
        %v370 = vld [vmem:[%s230 + $0x204] sm:$0xf]
        %v371 = vld [vmem:[%s230 + $0x208] sm:$0xf]
        %v372 = vld [vmem:[%s230 + $0x20c] sm:$0xf]
        %v373 = vld [vmem:[%s230 + $0x210] sm:$0xf]
        %v374 = vld [vmem:[%s230 + $0x214] sm:$0xf]
        %v375 = vld [vmem:[%s230 + $0x218] sm:$0xf]
        %v376 = vld [vmem:[%s230 + $0x21c] sm:$0xf]
        %v377 = vld [vmem:[%s230 + $0x220] sm:$0xf]
        %v378 = vld [vmem:[%s230 + $0x224] sm:$0xf]
        %v379 = vld [vmem:[%s230 + $0x228] sm:$0xf]
        %v380 = vld [vmem:[%s230 + $0x22c] sm:$0xf]
        %v381 = vld [vmem:[%s230 + $0x230] sm:$0xf]
        %v382 = vld [vmem:[%s230 + $0x234] sm:$0xf]
        %v383 = vld [vmem:[%s230 + $0x238] sm:$0xf]
        %v384 = vld [vmem:[%s230 + $0x23c] sm:$0xf]
        %v385 = vld [vmem:[%s230 + $0x240] sm:$0xf]
        %v386 = vld [vmem:[%s230 + $0x244] sm:$0xf]
        %v387 = vld [vmem:[%s230 + $0x248] sm:$0xf]
        %v388 = vld [vmem:[%s230 + $0x24c] sm:$0xf]
        %v389 = vld [vmem:[%s230 + $0x250] sm:$0xf]
        %v390 = vld [vmem:[%s230 + $0x254] sm:$0xf]
        %v391 = vld [vmem:[%s230 + $0x258] sm:$0xf]
        %v392 = vld [vmem:[%s230 + $0x25c] sm:$0xf]
        %v393 = vld [vmem:[%s230 + $0x260] sm:$0xf]
        %v394 = vld [vmem:[%s230 + $0x264] sm:$0xf]
        %v395 = vld [vmem:[%s230 + $0x268] sm:$0xf]
        %v396 = vld [vmem:[%s230 + $0x26c] sm:$0xf]
        %v397 = vld [vmem:[%s230 + $0x270] sm:$0xf]
        %v398 = vld [vmem:[%s230 + $0x274] sm:$0xf]
        %v399 = vld [vmem:[%s230 + $0x278] sm:$0xf]
        %v400 = vld [vmem:[%s230 + $0x27c] sm:$0xf]
        %v401 = vld [vmem:[%s230 + $0x280] sm:$0xf]
        %v402 = vld [vmem:[%s230 + $0x284] sm:$0xf]
        %v403 = vld [vmem:[%s230 + $0x288] sm:$0xf]
        %v404 = vld [vmem:[%s230 + $0x28c] sm:$0xf]
        %v405 = vld [vmem:[%s230 + $0x290] sm:$0xf]
        %v406 = vld [vmem:[%s230 + $0x294] sm:$0xf]
        %v407 = vld [vmem:[%s230 + $0x298] sm:$0xf]
        %v408 = vld [vmem:[%s230 + $0x29c] sm:$0xf]
        %v409 = vld [vmem:[%s230 + $0x2a0] sm:$0xf]
        %v410 = vld [vmem:[%s230 + $0x2a4] sm:$0xf]
        %v411 = vld [vmem:[%s230 + $0x2a8] sm:$0xf]
        %v412 = vld [vmem:[%s230 + $0x2ac] sm:$0xf]
        %v413 = vld [vmem:[%s230 + $0x2b0] sm:$0xf]
        %v414 = vld [vmem:[%s230 + $0x2b4] sm:$0xf]
        %v415 = vld [vmem:[%s230 + $0x2b8] sm:$0xf]
        %v416 = vld [vmem:[%s230 + $0x2bc] sm:$0xf]
        %v417 = vld [vmem:[%s230 + $0x2c0] sm:$0xf]
        %v418 = vld [vmem:[%s230 + $0x2c4] sm:$0xf]
        %v419 = vld [vmem:[%s230 + $0x2c8] sm:$0xf]
        %v420 = vld [vmem:[%s230 + $0x2cc] sm:$0xf]
        %v421 = vld [vmem:[%s230 + $0x2d0] sm:$0xf]
        %v422 = vld [vmem:[%s230 + $0x2d4] sm:$0xf]
        %v423 = vld [vmem:[%s230 + $0x2d8] sm:$0xf]
        %v424 = vld [vmem:[%s230 + $0x2dc] sm:$0xf]
        %v425 = vld [vmem:[%s230 + $0x2e0] sm:$0xf]
        %v426 = vld [vmem:[%s230 + $0x2e4] sm:$0xf]
        %v427 = vld [vmem:[%s230 + $0x2e8] sm:$0xf]
        %v428 = vld [vmem:[%s230 + $0x2ec] sm:$0xf]
        %v429 = vld [vmem:[%s230 + $0x2f0] sm:$0xf]
        %v430 = vld [vmem:[%s230 + $0x2f4] sm:$0xf]
        %v431 = vld [vmem:[%s230 + $0x2f8] sm:$0xf]
        %v432 = vld [vmem:[%s230 + $0x2fc] sm:$0xf]
        %v433 = vld [vmem:[%s230 + $0x300] sm:$0xf]
        %v434 = vld [vmem:[%s230 + $0x304] sm:$0xf]
        %v435 = vld [vmem:[%s230 + $0x308] sm:$0xf]
        %v436 = vld [vmem:[%s230 + $0x30c] sm:$0xf]
        %v437 = vld [vmem:[%s230 + $0x310] sm:$0xf]
        %v438 = vld [vmem:[%s230 + $0x314] sm:$0xf]
        %v439 = vld [vmem:[%s230 + $0x318] sm:$0xf]
        %v440 = vld [vmem:[%s230 + $0x31c] sm:$0xf]
        %v441 = vld [vmem:[%s230 + $0x320] sm:$0xf]
        %v442 = vld [vmem:[%s230 + $0x324] sm:$0xf]
        %v443 = vld [vmem:[%s230 + $0x328] sm:$0xf]
        %v444 = vld [vmem:[%s230 + $0x32c] sm:$0xf]
        %v445 = vld [vmem:[%s230 + $0x330] sm:$0xf]
        %v446 = vld [vmem:[%s230 + $0x334] sm:$0xf]
        %v447 = vld [vmem:[%s230 + $0x338] sm:$0xf]
        %v448 = vld [vmem:[%s230 + $0x33c] sm:$0xf]
        %v449 = vld [vmem:[%s230 + $0x340] sm:$0xf]
        %v450 = vld [vmem:[%s230 + $0x344] sm:$0xf]
        %v451 = vld [vmem:[%s230 + $0x348] sm:$0xf]
        %v452 = vld [vmem:[%s230 + $0x34c] sm:$0xf]
        %v453 = vld [vmem:[%s230 + $0x350] sm:$0xf]
        %v454 = vld [vmem:[%s230 + $0x354] sm:$0xf]
        %v455 = vld [vmem:[%s230 + $0x358] sm:$0xf]
        %v456 = vld [vmem:[%s230 + $0x35c] sm:$0xf]
        %v457 = vld [vmem:[%s230 + $0x360] sm:$0xf]
        %v458 = vld [vmem:[%s230 + $0x364] sm:$0xf]
        %v459 = vld [vmem:[%s230 + $0x368] sm:$0xf]
        %v460 = vld [vmem:[%s230 + $0x36c] sm:$0xf]
        %v461 = vld [vmem:[%s230 + $0x370] sm:$0xf]
        %v462 = vld [vmem:[%s230 + $0x374] sm:$0xf]
        %v463 = vld [vmem:[%s230 + $0x378] sm:$0xf]
        %v464 = vld [vmem:[%s230 + $0x37c] sm:$0xf]
        %v465 = vld [vmem:[%s230 + $0x380] sm:$0xf]
        %v466 = vld [vmem:[%s230 + $0x384] sm:$0xf]
        %v467 = vld [vmem:[%s230 + $0x388] sm:$0xf]
        %v468 = vld [vmem:[%s230 + $0x38c] sm:$0xf]
        %v469 = vld [vmem:[%s230 + $0x390] sm:$0xf]
        %v470 = vld [vmem:[%s230 + $0x394] sm:$0xf]
        %v471 = vld [vmem:[%s230 + $0x398] sm:$0xf]
        %v472 = vld [vmem:[%s230 + $0x39c] sm:$0xf]
        %v473 = vld [vmem:[%s230 + $0x3a0] sm:$0xf]
        %v474 = vld [vmem:[%s230 + $0x3a4] sm:$0xf]
        %v475 = vld [vmem:[%s230 + $0x3a8] sm:$0xf]
        %v476 = vld [vmem:[%s230 + $0x3ac] sm:$0xf]
        %v477 = vld [vmem:[%s230 + $0x3b0] sm:$0xf]
        %v478 = vld [vmem:[%s230 + $0x3b4] sm:$0xf]
        %v479 = vld [vmem:[%s230 + $0x3b8] sm:$0xf]
        %v480 = vld [vmem:[%s230 + $0x3bc] sm:$0xf]
        %v481 = vld [vmem:[%s230 + $0x3c0] sm:$0xf]
        %v482 = vld [vmem:[%s230 + $0x3c4] sm:$0xf]
        %v483 = vld [vmem:[%s230 + $0x3c8] sm:$0xf]
        %v484 = vld [vmem:[%s230 + $0x3cc] sm:$0xf]
        %v485 = vld [vmem:[%s230 + $0x3d0] sm:$0xf]
        %v486 = vld [vmem:[%s230 + $0x3d4] sm:$0xf]
        %v487 = vld [vmem:[%s230 + $0x3d8] sm:$0xf]
        %v488 = vld [vmem:[%s230 + $0x3dc] sm:$0xf]
        %v489 = vld [vmem:[%s230 + $0x3e0] sm:$0xf]
        %v490 = vld [vmem:[%s230 + $0x3e4] sm:$0xf]
        %v491 = vld [vmem:[%s230 + $0x3e8] sm:$0xf]
        %v492 = vld [vmem:[%s230 + $0x3ec] sm:$0xf]
        %v493 = vld [vmem:[%s230 + $0x3f0] sm:$0xf]
        %v494 = vld [vmem:[%s230 + $0x3f4] sm:$0xf]
        %v495 = vld [vmem:[%s230 + $0x3f8] sm:$0xf]
        %v496 = vld [vmem:[%s230 + $0x3fc] sm:$0xf]
        %v499 = vcombine.high %v239, %v239
        %v501 = vunpack.c.l.s4 1966171168
        %v502 = vunpack.c.0.s8 %v501
        %v503 = vlaneseq
        %v504 = vshrl.u32 %v503, 7
        %v505 = vsub.s32 %v502, %v504
        %v506 = vrot.slane %v239, %v505
        %v508 = vunpack.c.l.s4 1966171168
        %v509 = vunpack.c.0.s8 %v508
        %v510 = vlaneseq
        %v511 = vshrl.u32 %v510, 7
        %v512 = vsub.s32 %v509, %v511
        %v513 = vrot.slane %v499, %v512
        %v514 = vcombine.high %v506, %v506
        %v515 = vcombine.high %v513, %v513
        %v517 = vunpack.c.l.s4 1966171168
        %v518 = vunpack.c.0.s8 %v517
        %v519 = vlaneseq
        %v520 = vshrl.u32 %v519, 7
        %v521 = vsub.s32 %v518, %v520
        %v522 = vrot.slane %v506, %v521
        %v524 = vunpack.c.l.s4 1966171168
        %v525 = vunpack.c.0.s8 %v524
        %v526 = vlaneseq
        %v527 = vshrl.u32 %v526, 7
        %v528 = vsub.s32 %v525, %v527
        %v529 = vrot.slane %v513, %v528
        %v531 = vunpack.c.l.s4 1966171168
        %v532 = vunpack.c.0.s8 %v531
        %v533 = vlaneseq
        %v534 = vshrl.u32 %v533, 7
        %v535 = vsub.s32 %v532, %v534
        %v536 = vrot.slane %v514, %v535
        %v538 = vunpack.c.l.s4 1966171168
        %v539 = vunpack.c.0.s8 %v538
        %v540 = vlaneseq
        %v541 = vshrl.u32 %v540, 7
        %v542 = vsub.s32 %v539, %v541
        %v543 = vrot.slane %v515, %v542
        %v544 = vcombine.high %v522, %v522
        %v545 = vcombine.high %v529, %v529
        %v546 = vcombine.high %v536, %v536
        %v547 = vcombine.high %v543, %v543
        %v548 = vcombine.high %v240, %v240
        %v550 = vunpack.c.l.s4 1966171168
        %v551 = vunpack.c.0.s8 %v550
        %v552 = vlaneseq
        %v553 = vshrl.u32 %v552, 7
        %v554 = vsub.s32 %v551, %v553
        %v555 = vrot.slane %v240, %v554
        %v557 = vunpack.c.l.s4 1966171168
        %v558 = vunpack.c.0.s8 %v557
        %v559 = vlaneseq
        %v560 = vshrl.u32 %v559, 7
        %v561 = vsub.s32 %v558, %v560
        %v562 = vrot.slane %v548, %v561
        %v563 = vcombine.high %v555, %v555
        %v564 = vcombine.high %v562, %v562
        %v566 = vunpack.c.l.s4 1966171168
        %v567 = vunpack.c.0.s8 %v566
        %v568 = vlaneseq
        %v569 = vshrl.u32 %v568, 7
        %v570 = vsub.s32 %v567, %v569
        %v571 = vrot.slane %v555, %v570
        %v573 = vunpack.c.l.s4 1966171168
        %v574 = vunpack.c.0.s8 %v573
        %v575 = vlaneseq
        %v576 = vshrl.u32 %v575, 7
        %v577 = vsub.s32 %v574, %v576
        %v578 = vrot.slane %v562, %v577
        %v580 = vunpack.c.l.s4 1966171168
        %v581 = vunpack.c.0.s8 %v580
        %v582 = vlaneseq
        %v583 = vshrl.u32 %v582, 7
        %v584 = vsub.s32 %v581, %v583
        %v585 = vrot.slane %v563, %v584
        %v587 = vunpack.c.l.s4 1966171168
        %v588 = vunpack.c.0.s8 %v587
        %v589 = vlaneseq
        %v590 = vshrl.u32 %v589, 7
        %v591 = vsub.s32 %v588, %v590
        %v592 = vrot.slane %v564, %v591
        %v593 = vcombine.high %v571, %v571
        %v594 = vcombine.high %v578, %v578
        %v595 = vcombine.high %v585, %v585
        %v596 = vcombine.high %v592, %v592
        %v869 = vunpack.c.l.b16 %v241
        %v870 = vunpack.c.l.b16 %v242
        %v871 = vunpack.c.l.b16 %v243
        %v872 = vunpack.c.l.b16 %v244
        %v873 = vunpack.c.l.b16 %v245
        %v874 = vunpack.c.l.b16 %v246
        %v875 = vunpack.c.l.b16 %v247
        %v876 = vunpack.c.l.b16 %v248
        %v877 = vunpack.c.l.b16 %v249
        %v878 = vunpack.c.l.b16 %v250
        %v879 = vunpack.c.l.b16 %v251
        %v880 = vunpack.c.l.b16 %v252
        %v881 = vunpack.c.l.b16 %v253
        %v882 = vunpack.c.l.b16 %v254
        %v883 = vunpack.c.l.b16 %v255
        %v884 = vunpack.c.l.b16 %v256
        %v885 = vunpack.c.l.b16 %v257
        %v886 = vunpack.c.l.b16 %v258
        %v887 = vunpack.c.l.b16 %v259
        %v888 = vunpack.c.l.b16 %v260
        %v889 = vunpack.c.l.b16 %v261
        %v890 = vunpack.c.l.b16 %v262
        %v891 = vunpack.c.l.b16 %v263
        %v892 = vunpack.c.l.b16 %v264
        %v893 = vunpack.c.l.b16 %v265
        %v894 = vunpack.c.l.b16 %v266
        %v895 = vunpack.c.l.b16 %v267
        %v896 = vunpack.c.l.b16 %v268
        %v897 = vunpack.c.l.b16 %v269
        %v898 = vunpack.c.l.b16 %v270
        %v899 = vunpack.c.l.b16 %v271
        %v900 = vunpack.c.l.b16 %v272
        %v901 = vunpack.c.l.b16 %v273
        %v902 = vunpack.c.l.b16 %v274
        %v903 = vunpack.c.l.b16 %v275
        %v904 = vunpack.c.l.b16 %v276
        %v905 = vunpack.c.l.b16 %v277
        %v906 = vunpack.c.l.b16 %v278
        %v907 = vunpack.c.l.b16 %v279
        %v908 = vunpack.c.l.b16 %v280
        %v909 = vunpack.c.l.b16 %v281
        %v910 = vunpack.c.l.b16 %v282
        %v911 = vunpack.c.l.b16 %v283
        %v912 = vunpack.c.l.b16 %v284
        %v913 = vunpack.c.l.b16 %v285
        %v914 = vunpack.c.l.b16 %v286
        %v915 = vunpack.c.l.b16 %v287
        %v916 = vunpack.c.l.b16 %v288
        %v917 = vunpack.c.l.b16 %v289
        %v918 = vunpack.c.l.b16 %v290
        %v919 = vunpack.c.l.b16 %v291
        %v920 = vunpack.c.l.b16 %v292
        %v921 = vunpack.c.l.b16 %v293
        %v922 = vunpack.c.l.b16 %v294
        %v923 = vunpack.c.l.b16 %v295
        %v924 = vunpack.c.l.b16 %v296
        %v925 = vunpack.c.l.b16 %v297
        %v926 = vunpack.c.l.b16 %v298
        %v927 = vunpack.c.l.b16 %v299
        %v928 = vunpack.c.l.b16 %v300
        %v929 = vunpack.c.l.b16 %v301
        %v930 = vunpack.c.l.b16 %v302
        %v931 = vunpack.c.l.b16 %v303
        %v932 = vunpack.c.l.b16 %v304
        %v933 = vunpack.c.l.b16 %v305
        %v934 = vunpack.c.l.b16 %v306
        %v935 = vunpack.c.l.b16 %v307
        %v936 = vunpack.c.l.b16 %v308
        %v937 = vunpack.c.l.b16 %v309
        %v938 = vunpack.c.l.b16 %v310
        %v939 = vunpack.c.l.b16 %v311
        %v940 = vunpack.c.l.b16 %v312
        %v941 = vunpack.c.l.b16 %v313
        %v942 = vunpack.c.l.b16 %v314
        %v943 = vunpack.c.l.b16 %v315
        %v944 = vunpack.c.l.b16 %v316
        %v945 = vunpack.c.l.b16 %v317
        %v946 = vunpack.c.l.b16 %v318
        %v947 = vunpack.c.l.b16 %v319
        %v948 = vunpack.c.l.b16 %v320
        %v949 = vunpack.c.l.b16 %v321
        %v950 = vunpack.c.l.b16 %v322
        %v951 = vunpack.c.l.b16 %v323
        %v952 = vunpack.c.l.b16 %v324
        %v953 = vunpack.c.l.b16 %v325
        %v954 = vunpack.c.l.b16 %v326
        %v955 = vunpack.c.l.b16 %v327
        %v956 = vunpack.c.l.b16 %v328
        %v957 = vunpack.c.l.b16 %v329
        %v958 = vunpack.c.l.b16 %v330
        %v959 = vunpack.c.l.b16 %v331
        %v960 = vunpack.c.l.b16 %v332
        %v961 = vunpack.c.l.b16 %v333
        %v962 = vunpack.c.l.b16 %v334
        %v963 = vunpack.c.l.b16 %v335
        %v964 = vunpack.c.l.b16 %v336
        %v965 = vunpack.c.l.b16 %v337
        %v966 = vunpack.c.l.b16 %v338
        %v967 = vunpack.c.l.b16 %v339
        %v968 = vunpack.c.l.b16 %v340
        %v969 = vunpack.c.l.b16 %v341
        %v970 = vunpack.c.l.b16 %v342
        %v971 = vunpack.c.l.b16 %v343
        %v972 = vunpack.c.l.b16 %v344
        %v973 = vunpack.c.l.b16 %v345
        %v974 = vunpack.c.l.b16 %v346
        %v975 = vunpack.c.l.b16 %v347
        %v976 = vunpack.c.l.b16 %v348
        %v977 = vunpack.c.l.b16 %v349
        %v978 = vunpack.c.l.b16 %v350
        %v979 = vunpack.c.l.b16 %v351
        %v980 = vunpack.c.l.b16 %v352
        %v981 = vunpack.c.l.b16 %v353
        %v982 = vunpack.c.l.b16 %v354
        %v983 = vunpack.c.l.b16 %v355
        %v984 = vunpack.c.l.b16 %v356
        %v985 = vunpack.c.l.b16 %v357
        %v986 = vunpack.c.l.b16 %v358
        %v987 = vunpack.c.l.b16 %v359
        %v988 = vunpack.c.l.b16 %v360
        %v989 = vunpack.c.l.b16 %v361
        %v990 = vunpack.c.l.b16 %v362
        %v991 = vunpack.c.l.b16 %v363
        %v992 = vunpack.c.l.b16 %v364
        %v993 = vunpack.c.l.b16 %v365
        %v994 = vunpack.c.l.b16 %v366
        %v995 = vunpack.c.l.b16 %v367
        %v996 = vunpack.c.l.b16 %v368
        %v997 = vunpack.c.l.b16 %v369
        %v998 = vunpack.c.l.b16 %v370
        %v999 = vunpack.c.l.b16 %v371
        %v1000 = vunpack.c.l.b16 %v372
        %v1001 = vunpack.c.l.b16 %v373
        %v1002 = vunpack.c.l.b16 %v374
        %v1003 = vunpack.c.l.b16 %v375
        %v1004 = vunpack.c.l.b16 %v376
        %v1005 = vunpack.c.l.b16 %v377
        %v1006 = vunpack.c.l.b16 %v378
        %v1007 = vunpack.c.l.b16 %v379
        %v1008 = vunpack.c.l.b16 %v380
        %v1009 = vunpack.c.l.b16 %v381
        %v1010 = vunpack.c.l.b16 %v382
        %v1011 = vunpack.c.l.b16 %v383
        %v1012 = vunpack.c.l.b16 %v384
        %v1013 = vunpack.c.l.b16 %v385
        %v1014 = vunpack.c.l.b16 %v386
        %v1015 = vunpack.c.l.b16 %v387
        %v1016 = vunpack.c.l.b16 %v388
        %v1017 = vunpack.c.l.b16 %v389
        %v1018 = vunpack.c.l.b16 %v390
        %v1019 = vunpack.c.l.b16 %v391
        %v1020 = vunpack.c.l.b16 %v392
        %v1021 = vunpack.c.l.b16 %v393
        %v1022 = vunpack.c.l.b16 %v394
        %v1023 = vunpack.c.l.b16 %v395
        %v1024 = vunpack.c.l.b16 %v396
        %v1025 = vunpack.c.l.b16 %v397
        %v1026 = vunpack.c.l.b16 %v398
        %v1027 = vunpack.c.l.b16 %v399
        %v1028 = vunpack.c.l.b16 %v400
        %v1029 = vunpack.c.l.b16 %v401
        %v1030 = vunpack.c.l.b16 %v402
        %v1031 = vunpack.c.l.b16 %v403
        %v1032 = vunpack.c.l.b16 %v404
        %v1033 = vunpack.c.l.b16 %v405
        %v1034 = vunpack.c.l.b16 %v406
        %v1035 = vunpack.c.l.b16 %v407
        %v1036 = vunpack.c.l.b16 %v408
        %v1037 = vunpack.c.l.b16 %v409
        %v1038 = vunpack.c.l.b16 %v410
        %v1039 = vunpack.c.l.b16 %v411
        %v1040 = vunpack.c.l.b16 %v412
        %v1041 = vunpack.c.l.b16 %v413
        %v1042 = vunpack.c.l.b16 %v414
        %v1043 = vunpack.c.l.b16 %v415
        %v1044 = vunpack.c.l.b16 %v416
        %v1045 = vunpack.c.l.b16 %v417
        %v1046 = vunpack.c.l.b16 %v418
        %v1047 = vunpack.c.l.b16 %v419
        %v1048 = vunpack.c.l.b16 %v420
        %v1049 = vunpack.c.l.b16 %v421
        %v1050 = vunpack.c.l.b16 %v422
        %v1051 = vunpack.c.l.b16 %v423
        %v1052 = vunpack.c.l.b16 %v424
        %v1053 = vunpack.c.l.b16 %v425
        %v1054 = vunpack.c.l.b16 %v426
        %v1055 = vunpack.c.l.b16 %v427
        %v1056 = vunpack.c.l.b16 %v428
        %v1057 = vunpack.c.l.b16 %v429
        %v1058 = vunpack.c.l.b16 %v430
        %v1059 = vunpack.c.l.b16 %v431
        %v1060 = vunpack.c.l.b16 %v432
        %v1061 = vunpack.c.l.b16 %v433
        %v1062 = vunpack.c.l.b16 %v434
        %v1063 = vunpack.c.l.b16 %v435
        %v1064 = vunpack.c.l.b16 %v436
        %v1065 = vunpack.c.l.b16 %v437
        %v1066 = vunpack.c.l.b16 %v438
        %v1067 = vunpack.c.l.b16 %v439
        %v1068 = vunpack.c.l.b16 %v440
        %v1069 = vunpack.c.l.b16 %v441
        %v1070 = vunpack.c.l.b16 %v442
        %v1071 = vunpack.c.l.b16 %v443
        %v1072 = vunpack.c.l.b16 %v444
        %v1073 = vunpack.c.l.b16 %v445
        %v1074 = vunpack.c.l.b16 %v446
        %v1075 = vunpack.c.l.b16 %v447
        %v1076 = vunpack.c.l.b16 %v448
        %v1077 = vunpack.c.l.b16 %v449
        %v1078 = vunpack.c.l.b16 %v450
        %v1079 = vunpack.c.l.b16 %v451
        %v1080 = vunpack.c.l.b16 %v452
        %v1081 = vunpack.c.l.b16 %v453
        %v1082 = vunpack.c.l.b16 %v454
        %v1083 = vunpack.c.l.b16 %v455
        %v1084 = vunpack.c.l.b16 %v456
        %v1085 = vunpack.c.l.b16 %v457
        %v1086 = vunpack.c.l.b16 %v458
        %v1087 = vunpack.c.l.b16 %v459
        %v1088 = vunpack.c.l.b16 %v460
        %v1089 = vunpack.c.l.b16 %v461
        %v1090 = vunpack.c.l.b16 %v462
        %v1091 = vunpack.c.l.b16 %v463
        %v1092 = vunpack.c.l.b16 %v464
        %v1093 = vunpack.c.l.b16 %v465
        %v1094 = vunpack.c.l.b16 %v466
        %v1095 = vunpack.c.l.b16 %v467
        %v1096 = vunpack.c.l.b16 %v468
        %v1097 = vunpack.c.l.b16 %v469
        %v1098 = vunpack.c.l.b16 %v470
        %v1099 = vunpack.c.l.b16 %v471
        %v1100 = vunpack.c.l.b16 %v472
        %v1101 = vunpack.c.l.b16 %v473
        %v1102 = vunpack.c.l.b16 %v474
        %v1103 = vunpack.c.l.b16 %v475
        %v1104 = vunpack.c.l.b16 %v476
        %v1105 = vunpack.c.l.b16 %v477
        %v1106 = vunpack.c.l.b16 %v478
        %v1107 = vunpack.c.l.b16 %v479
        %v1108 = vunpack.c.l.b16 %v480
        %v1109 = vunpack.c.l.b16 %v481
        %v1110 = vunpack.c.l.b16 %v482
        %v1111 = vunpack.c.l.b16 %v483
        %v1112 = vunpack.c.l.b16 %v484
        %v1113 = vunpack.c.l.b16 %v485
        %v1114 = vunpack.c.l.b16 %v486
        %v1115 = vunpack.c.l.b16 %v487
        %v1116 = vunpack.c.l.b16 %v488
        %v1117 = vunpack.c.l.b16 %v489
        %v1118 = vunpack.c.l.b16 %v490
        %v1119 = vunpack.c.l.b16 %v491
        %v1120 = vunpack.c.l.b16 %v492
        %v1121 = vunpack.c.l.b16 %v493
        %v1122 = vunpack.c.l.b16 %v494
        %v1123 = vunpack.c.l.b16 %v495
        %v1124 = vunpack.c.l.b16 %v496
        %v1125 = vpack.c.b16 %v870, %v869
        %v1126 = vpack.c.b16 %v872, %v871
        %v1127 = vpack.c.b16 %v874, %v873
        %v1128 = vpack.c.b16 %v876, %v875
        %v1129 = vpack.c.b16 %v878, %v877
        %v1130 = vpack.c.b16 %v880, %v879
        %v1131 = vpack.c.b16 %v882, %v881
        %v1132 = vpack.c.b16 %v884, %v883
        %v1133 = vpack.c.b16 %v886, %v885
        %v1134 = vpack.c.b16 %v888, %v887
        %v1135 = vpack.c.b16 %v890, %v889
        %v1136 = vpack.c.b16 %v892, %v891
        %v1137 = vpack.c.b16 %v894, %v893
        %v1138 = vpack.c.b16 %v896, %v895
        %v1139 = vpack.c.b16 %v898, %v897
        %v1140 = vpack.c.b16 %v900, %v899
        %v1141 = vpack.c.b16 %v902, %v901
        %v1142 = vpack.c.b16 %v904, %v903
        %v1143 = vpack.c.b16 %v906, %v905
        %v1144 = vpack.c.b16 %v908, %v907
        %v1145 = vpack.c.b16 %v910, %v909
        %v1146 = vpack.c.b16 %v912, %v911
        %v1147 = vpack.c.b16 %v914, %v913
        %v1148 = vpack.c.b16 %v916, %v915
        %v1149 = vpack.c.b16 %v918, %v917
        %v1150 = vpack.c.b16 %v920, %v919
        %v1151 = vpack.c.b16 %v922, %v921
        %v1152 = vpack.c.b16 %v924, %v923
        %v1153 = vpack.c.b16 %v926, %v925
        %v1154 = vpack.c.b16 %v928, %v927
        %v1155 = vpack.c.b16 %v930, %v929
        %v1156 = vpack.c.b16 %v932, %v931
        %v1157 = vpack.c.b16 %v934, %v933
        %v1158 = vpack.c.b16 %v936, %v935
        %v1159 = vpack.c.b16 %v938, %v937
        %v1160 = vpack.c.b16 %v940, %v939
        %v1161 = vpack.c.b16 %v942, %v941
        %v1162 = vpack.c.b16 %v944, %v943
        %v1163 = vpack.c.b16 %v946, %v945
        %v1164 = vpack.c.b16 %v948, %v947
        %v1165 = vpack.c.b16 %v950, %v949
        %v1166 = vpack.c.b16 %v952, %v951
        %v1167 = vpack.c.b16 %v954, %v953
        %v1168 = vpack.c.b16 %v956, %v955
        %v1169 = vpack.c.b16 %v958, %v957
        %v1170 = vpack.c.b16 %v960, %v959
        %v1171 = vpack.c.b16 %v962, %v961
        %v1172 = vpack.c.b16 %v964, %v963
        %v1173 = vpack.c.b16 %v966, %v965
        %v1174 = vpack.c.b16 %v968, %v967
        %v1175 = vpack.c.b16 %v970, %v969
        %v1176 = vpack.c.b16 %v972, %v971
        %v1177 = vpack.c.b16 %v974, %v973
        %v1178 = vpack.c.b16 %v976, %v975
        %v1179 = vpack.c.b16 %v978, %v977
        %v1180 = vpack.c.b16 %v980, %v979
        %v1181 = vpack.c.b16 %v982, %v981
        %v1182 = vpack.c.b16 %v984, %v983
        %v1183 = vpack.c.b16 %v986, %v985
        %v1184 = vpack.c.b16 %v988, %v987
        %v1185 = vpack.c.b16 %v990, %v989
        %v1186 = vpack.c.b16 %v992, %v991
        %v1187 = vpack.c.b16 %v994, %v993
        %v1188 = vpack.c.b16 %v996, %v995
        %v1189 = vpack.c.b16 %v998, %v997
        %v1190 = vpack.c.b16 %v1000, %v999
        %v1191 = vpack.c.b16 %v1002, %v1001
        %v1192 = vpack.c.b16 %v1004, %v1003
        %v1193 = vpack.c.b16 %v1006, %v1005
        %v1194 = vpack.c.b16 %v1008, %v1007
        %v1195 = vpack.c.b16 %v1010, %v1009
        %v1196 = vpack.c.b16 %v1012, %v1011
        %v1197 = vpack.c.b16 %v1014, %v1013
        %v1198 = vpack.c.b16 %v1016, %v1015
        %v1199 = vpack.c.b16 %v1018, %v1017
        %v1200 = vpack.c.b16 %v1020, %v1019
        %v1201 = vpack.c.b16 %v1022, %v1021
        %v1202 = vpack.c.b16 %v1024, %v1023
        %v1203 = vpack.c.b16 %v1026, %v1025
        %v1204 = vpack.c.b16 %v1028, %v1027
        %v1205 = vpack.c.b16 %v1030, %v1029
        %v1206 = vpack.c.b16 %v1032, %v1031
        %v1207 = vpack.c.b16 %v1034, %v1033
        %v1208 = vpack.c.b16 %v1036, %v1035
        %v1209 = vpack.c.b16 %v1038, %v1037
        %v1210 = vpack.c.b16 %v1040, %v1039
        %v1211 = vpack.c.b16 %v1042, %v1041
        %v1212 = vpack.c.b16 %v1044, %v1043
        %v1213 = vpack.c.b16 %v1046, %v1045
        %v1214 = vpack.c.b16 %v1048, %v1047
        %v1215 = vpack.c.b16 %v1050, %v1049
        %v1216 = vpack.c.b16 %v1052, %v1051
        %v1217 = vpack.c.b16 %v1054, %v1053
        %v1218 = vpack.c.b16 %v1056, %v1055
        %v1219 = vpack.c.b16 %v1058, %v1057
        %v1220 = vpack.c.b16 %v1060, %v1059
        %v1221 = vpack.c.b16 %v1062, %v1061
        %v1222 = vpack.c.b16 %v1064, %v1063
        %v1223 = vpack.c.b16 %v1066, %v1065
        %v1224 = vpack.c.b16 %v1068, %v1067
        %v1225 = vpack.c.b16 %v1070, %v1069
        %v1226 = vpack.c.b16 %v1072, %v1071
        %v1227 = vpack.c.b16 %v1074, %v1073
        %v1228 = vpack.c.b16 %v1076, %v1075
        %v1229 = vpack.c.b16 %v1078, %v1077
        %v1230 = vpack.c.b16 %v1080, %v1079
        %v1231 = vpack.c.b16 %v1082, %v1081
        %v1232 = vpack.c.b16 %v1084, %v1083
        %v1233 = vpack.c.b16 %v1086, %v1085
        %v1234 = vpack.c.b16 %v1088, %v1087
        %v1235 = vpack.c.b16 %v1090, %v1089
        %v1236 = vpack.c.b16 %v1092, %v1091
        %v1237 = vpack.c.b16 %v1094, %v1093
        %v1238 = vpack.c.b16 %v1096, %v1095
        %v1239 = vpack.c.b16 %v1098, %v1097
        %v1240 = vpack.c.b16 %v1100, %v1099
        %v1241 = vpack.c.b16 %v1102, %v1101
        %v1242 = vpack.c.b16 %v1104, %v1103
        %v1243 = vpack.c.b16 %v1106, %v1105
        %v1244 = vpack.c.b16 %v1108, %v1107
        %v1245 = vpack.c.b16 %v1110, %v1109
        %v1246 = vpack.c.b16 %v1112, %v1111
        %v1247 = vpack.c.b16 %v1114, %v1113
        %v1248 = vpack.c.b16 %v1116, %v1115
        %v1249 = vpack.c.b16 %v1118, %v1117
        %v1250 = vpack.c.b16 %v1120, %v1119
        %v1251 = vpack.c.b16 %v1122, %v1121
        %v1252 = vpack.c.b16 %v1124, %v1123
        %1381 = vmatprep.subr.bf16.mxu0 0
        %1382 = vmatpush1.bf16.msra.mxu0 %v1132
        %1383 = vmatprep.subr.bf16.mxu0 0
        %1384 = vmatpush1.bf16.msra.mxu0 %v1131
        %1385 = vmatprep.subr.bf16.mxu0 0
        %1386 = vmatpush1.bf16.msra.mxu0 %v1130
        %1387 = vmatprep.subr.bf16.mxu0 0
        %1388 = vmatpush1.bf16.msra.mxu0 %v1129
        %1389 = vmatprep.subr.bf16.mxu0 0
        %1390 = vmatpush1.bf16.msra.mxu0 %v1128
        %1391 = vmatprep.subr.bf16.mxu0 0
        %1392 = vmatpush1.bf16.msra.mxu0 %v1127
        %1393 = vmatprep.subr.bf16.mxu0 0
        %1394 = vmatpush1.bf16.msra.mxu0 %v1126
        %1395 = vmatprep.subr.bf16.mxu0 0
        %1396 = vmatpush1.bf16.msra.mxu0 %v1125
        %1397 = vmatprep.subr.bf16.mxu0 0
        %1398 = vmatpush2.bf16.msra.mxu0 %v1140
        %1399 = vmatprep.subr.bf16.mxu0 0
        %1400 = vmatpush2.bf16.msra.mxu0 %v1139
        %1401 = vmatprep.subr.bf16.mxu0 0
        %1402 = vmatpush2.bf16.msra.mxu0 %v1138
        %1403 = vmatprep.subr.bf16.mxu0 0
        %1404 = vmatpush2.bf16.msra.mxu0 %v1137
        %1405 = vmatprep.subr.bf16.mxu0 0
        %1406 = vmatpush2.bf16.msra.mxu0 %v1136
        %1407 = vmatprep.subr.bf16.mxu0 0
        %1408 = vmatpush2.bf16.msra.mxu0 %v1135
        %1409 = vmatprep.subr.bf16.mxu0 0
        %1410 = vmatpush2.bf16.msra.mxu0 %v1134
        %1411 = vmatprep.subr.bf16.mxu0 0
        %1412 = vmatpush2.bf16.msra.mxu0 %v1133
        %1413 = vmatprep.mubr.bf16.mxu0 %v536
        %1414 = vmatmul.mubr.bf16.gmra.mxu0 %v522
        %v1415 = vpop.f32.mrf.mxu0
        %v1416 = vadd.f32 0.0, %v1415
        %v1417 = vpop.f32.mrf.mxu0
        %v1418 = vpop.f32.mrf.mxu0
        %v1419 = vpop.f32.mrf.mxu0
        %1420 = vdwg.mxu0
        %1421 = vmatprep.subr.bf16.mxu0 0
        %1422 = vmatpush1.bf16.msra.mxu0 %v1148
        %1423 = vmatprep.subr.bf16.mxu0 0
        %1424 = vmatpush1.bf16.msra.mxu0 %v1147
        %1425 = vmatprep.subr.bf16.mxu0 0
        %1426 = vmatpush1.bf16.msra.mxu0 %v1146
        %1427 = vmatprep.subr.bf16.mxu0 0
        %1428 = vmatpush1.bf16.msra.mxu0 %v1145
        %1429 = vmatprep.subr.bf16.mxu0 0
        %1430 = vmatpush1.bf16.msra.mxu0 %v1144
        %1431 = vmatprep.subr.bf16.mxu0 0
        %1432 = vmatpush1.bf16.msra.mxu0 %v1143
        %1433 = vmatprep.subr.bf16.mxu0 0
        %1434 = vmatpush1.bf16.msra.mxu0 %v1142
        %1435 = vmatprep.subr.bf16.mxu0 0
        %1436 = vmatpush1.bf16.msra.mxu0 %v1141
        %1437 = vmatprep.subr.bf16.mxu0 0
        %1438 = vmatpush2.bf16.msra.mxu0 %v1156
        %1439 = vmatprep.subr.bf16.mxu0 0
        %1440 = vmatpush2.bf16.msra.mxu0 %v1155
        %1441 = vmatprep.subr.bf16.mxu0 0
        %1442 = vmatpush2.bf16.msra.mxu0 %v1154
        %1443 = vmatprep.subr.bf16.mxu0 0
        %1444 = vmatpush2.bf16.msra.mxu0 %v1153
        %1445 = vmatprep.subr.bf16.mxu0 0
        %1446 = vmatpush2.bf16.msra.mxu0 %v1152
        %1447 = vmatprep.subr.bf16.mxu0 0
        %1448 = vmatpush2.bf16.msra.mxu0 %v1151
        %1449 = vmatprep.subr.bf16.mxu0 0
        %1450 = vmatpush2.bf16.msra.mxu0 %v1150
        %1451 = vmatprep.subr.bf16.mxu0 0
        %1452 = vmatpush2.bf16.msra.mxu0 %v1149
        %1453 = vmatprep.mubr.bf16.mxu0 %v546
        %1454 = vmatmul.mubr.bf16.gmra.mxu0 %v544
        %v1455 = vpop.f32.mrf.mxu0
        %v1456 = vadd.f32 %v1416, %v1455
        %v1457 = vpop.f32.mrf.mxu0
        %v1458 = vpop.f32.mrf.mxu0
        %v1459 = vpop.f32.mrf.mxu0
        %1460 = vdwg.mxu0
        %1461 = vmatprep.subr.bf16.mxu0 0
        %1462 = vmatpush1.bf16.msra.mxu0 %v1164
        %1463 = vmatprep.subr.bf16.mxu0 0
        %1464 = vmatpush1.bf16.msra.mxu0 %v1163
        %1465 = vmatprep.subr.bf16.mxu0 0
        %1466 = vmatpush1.bf16.msra.mxu0 %v1162
        %1467 = vmatprep.subr.bf16.mxu0 0
        %1468 = vmatpush1.bf16.msra.mxu0 %v1161
        %1469 = vmatprep.subr.bf16.mxu0 0
        %1470 = vmatpush1.bf16.msra.mxu0 %v1160
        %1471 = vmatprep.subr.bf16.mxu0 0
        %1472 = vmatpush1.bf16.msra.mxu0 %v1159
        %1473 = vmatprep.subr.bf16.mxu0 0
        %1474 = vmatpush1.bf16.msra.mxu0 %v1158
        %1475 = vmatprep.subr.bf16.mxu0 0
        %1476 = vmatpush1.bf16.msra.mxu0 %v1157
        %1477 = vmatprep.subr.bf16.mxu0 0
        %1478 = vmatpush2.bf16.msra.mxu0 %v1172
        %1479 = vmatprep.subr.bf16.mxu0 0
        %1480 = vmatpush2.bf16.msra.mxu0 %v1171
        %1481 = vmatprep.subr.bf16.mxu0 0
        %1482 = vmatpush2.bf16.msra.mxu0 %v1170
        %1483 = vmatprep.subr.bf16.mxu0 0
        %1484 = vmatpush2.bf16.msra.mxu0 %v1169
        %1485 = vmatprep.subr.bf16.mxu0 0
        %1486 = vmatpush2.bf16.msra.mxu0 %v1168
        %1487 = vmatprep.subr.bf16.mxu0 0
        %1488 = vmatpush2.bf16.msra.mxu0 %v1167
        %1489 = vmatprep.subr.bf16.mxu0 0
        %1490 = vmatpush2.bf16.msra.mxu0 %v1166
        %1491 = vmatprep.subr.bf16.mxu0 0
        %1492 = vmatpush2.bf16.msra.mxu0 %v1165
        %1493 = vmatprep.mubr.bf16.mxu0 %v543
        %1494 = vmatmul.mubr.bf16.gmra.mxu0 %v529
        %v1495 = vpop.f32.mrf.mxu0
        %v1496 = vadd.f32 %v1456, %v1495
        %v1497 = vpop.f32.mrf.mxu0
        %v1498 = vpop.f32.mrf.mxu0
        %v1499 = vpop.f32.mrf.mxu0
        %1500 = vdwg.mxu0
        %1501 = vmatprep.subr.bf16.mxu0 0
        %1502 = vmatpush1.bf16.msra.mxu0 %v1180
        %1503 = vmatprep.subr.bf16.mxu0 0
        %1504 = vmatpush1.bf16.msra.mxu0 %v1179
        %1505 = vmatprep.subr.bf16.mxu0 0
        %1506 = vmatpush1.bf16.msra.mxu0 %v1178
        %1507 = vmatprep.subr.bf16.mxu0 0
        %1508 = vmatpush1.bf16.msra.mxu0 %v1177
        %1509 = vmatprep.subr.bf16.mxu0 0
        %1510 = vmatpush1.bf16.msra.mxu0 %v1176
        %1511 = vmatprep.subr.bf16.mxu0 0
        %1512 = vmatpush1.bf16.msra.mxu0 %v1175
        %1513 = vmatprep.subr.bf16.mxu0 0
        %1514 = vmatpush1.bf16.msra.mxu0 %v1174
        %1515 = vmatprep.subr.bf16.mxu0 0
        %1516 = vmatpush1.bf16.msra.mxu0 %v1173
        %1517 = vmatprep.subr.bf16.mxu0 0
        %1518 = vmatpush2.bf16.msra.mxu0 %v1188
        %1519 = vmatprep.subr.bf16.mxu0 0
        %1520 = vmatpush2.bf16.msra.mxu0 %v1187
        %1521 = vmatprep.subr.bf16.mxu0 0
        %1522 = vmatpush2.bf16.msra.mxu0 %v1186
        %1523 = vmatprep.subr.bf16.mxu0 0
        %1524 = vmatpush2.bf16.msra.mxu0 %v1185
        %1525 = vmatprep.subr.bf16.mxu0 0
        %1526 = vmatpush2.bf16.msra.mxu0 %v1184
        %1527 = vmatprep.subr.bf16.mxu0 0
        %1528 = vmatpush2.bf16.msra.mxu0 %v1183
        %1529 = vmatprep.subr.bf16.mxu0 0
        %1530 = vmatpush2.bf16.msra.mxu0 %v1182
        %1531 = vmatprep.subr.bf16.mxu0 0
        %1532 = vmatpush2.bf16.msra.mxu0 %v1181
        %1533 = vmatprep.mubr.bf16.mxu0 %v547
        %1534 = vmatmul.mubr.bf16.gmra.mxu0 %v545
        %v1535 = vpop.f32.mrf.mxu0
        %v1536 = vadd.f32 %v1496, %v1535
        %v1537 = vpop.f32.mrf.mxu0
        %v1538 = vpop.f32.mrf.mxu0
        %v1539 = vpop.f32.mrf.mxu0
        %1540 = vdwg.mxu0
        %1541 = vmatprep.subr.bf16.mxu0 0
        %1542 = vmatpush1.bf16.msra.mxu0 %v1196
        %1543 = vmatprep.subr.bf16.mxu0 0
        %1544 = vmatpush1.bf16.msra.mxu0 %v1195
        %1545 = vmatprep.subr.bf16.mxu0 0
        %1546 = vmatpush1.bf16.msra.mxu0 %v1194
        %1547 = vmatprep.subr.bf16.mxu0 0
        %1548 = vmatpush1.bf16.msra.mxu0 %v1193
        %1549 = vmatprep.subr.bf16.mxu0 0
        %1550 = vmatpush1.bf16.msra.mxu0 %v1192
        %1551 = vmatprep.subr.bf16.mxu0 0
        %1552 = vmatpush1.bf16.msra.mxu0 %v1191
        %1553 = vmatprep.subr.bf16.mxu0 0
        %1554 = vmatpush1.bf16.msra.mxu0 %v1190
        %1555 = vmatprep.subr.bf16.mxu0 0
        %1556 = vmatpush1.bf16.msra.mxu0 %v1189
        %1557 = vmatprep.subr.bf16.mxu0 0
        %1558 = vmatpush2.bf16.msra.mxu0 %v1204
        %1559 = vmatprep.subr.bf16.mxu0 0
        %1560 = vmatpush2.bf16.msra.mxu0 %v1203
        %1561 = vmatprep.subr.bf16.mxu0 0
        %1562 = vmatpush2.bf16.msra.mxu0 %v1202
        %1563 = vmatprep.subr.bf16.mxu0 0
        %1564 = vmatpush2.bf16.msra.mxu0 %v1201
        %1565 = vmatprep.subr.bf16.mxu0 0
        %1566 = vmatpush2.bf16.msra.mxu0 %v1200
        %1567 = vmatprep.subr.bf16.mxu0 0
        %1568 = vmatpush2.bf16.msra.mxu0 %v1199
        %1569 = vmatprep.subr.bf16.mxu0 0
        %1570 = vmatpush2.bf16.msra.mxu0 %v1198
        %1571 = vmatprep.subr.bf16.mxu0 0
        %1572 = vmatpush2.bf16.msra.mxu0 %v1197
        %1573 = vmatprep.mubr.bf16.mxu0 %v585
        %1574 = vmatmul.mubr.bf16.gmra.mxu0 %v571
        %v1575 = vpop.f32.mrf.mxu0
        %v1576 = vadd.f32 %v1536, %v1575
        %v1577 = vpop.f32.mrf.mxu0
        %v1578 = vpop.f32.mrf.mxu0
        %v1579 = vpop.f32.mrf.mxu0
        %1580 = vdwg.mxu0
        %1581 = vmatprep.subr.bf16.mxu0 0
        %1582 = vmatpush1.bf16.msra.mxu0 %v1212
        %1583 = vmatprep.subr.bf16.mxu0 0
        %1584 = vmatpush1.bf16.msra.mxu0 %v1211
        %1585 = vmatprep.subr.bf16.mxu0 0
        %1586 = vmatpush1.bf16.msra.mxu0 %v1210
        %1587 = vmatprep.subr.bf16.mxu0 0
        %1588 = vmatpush1.bf16.msra.mxu0 %v1209
        %1589 = vmatprep.subr.bf16.mxu0 0
        %1590 = vmatpush1.bf16.msra.mxu0 %v1208
        %1591 = vmatprep.subr.bf16.mxu0 0
        %1592 = vmatpush1.bf16.msra.mxu0 %v1207
        %1593 = vmatprep.subr.bf16.mxu0 0
        %1594 = vmatpush1.bf16.msra.mxu0 %v1206
        %1595 = vmatprep.subr.bf16.mxu0 0
        %1596 = vmatpush1.bf16.msra.mxu0 %v1205
        %1597 = vmatprep.subr.bf16.mxu0 0
        %1598 = vmatpush2.bf16.msra.mxu0 %v1220
        %1599 = vmatprep.subr.bf16.mxu0 0
        %1600 = vmatpush2.bf16.msra.mxu0 %v1219
        %1601 = vmatprep.subr.bf16.mxu0 0
        %1602 = vmatpush2.bf16.msra.mxu0 %v1218
        %1603 = vmatprep.subr.bf16.mxu0 0
        %1604 = vmatpush2.bf16.msra.mxu0 %v1217
        %1605 = vmatprep.subr.bf16.mxu0 0
        %1606 = vmatpush2.bf16.msra.mxu0 %v1216
        %1607 = vmatprep.subr.bf16.mxu0 0
        %1608 = vmatpush2.bf16.msra.mxu0 %v1215
        %1609 = vmatprep.subr.bf16.mxu0 0
        %1610 = vmatpush2.bf16.msra.mxu0 %v1214
        %1611 = vmatprep.subr.bf16.mxu0 0
        %1612 = vmatpush2.bf16.msra.mxu0 %v1213
        %1613 = vmatprep.mubr.bf16.mxu0 %v595
        %1614 = vmatmul.mubr.bf16.gmra.mxu0 %v593
        %v1615 = vpop.f32.mrf.mxu0
        %v1616 = vadd.f32 %v1576, %v1615
        %v1617 = vpop.f32.mrf.mxu0
        %v1618 = vpop.f32.mrf.mxu0
        %v1619 = vpop.f32.mrf.mxu0
        %1620 = vdwg.mxu0
        %1621 = vmatprep.subr.bf16.mxu0 0
        %1622 = vmatpush1.bf16.msra.mxu0 %v1228
        %1623 = vmatprep.subr.bf16.mxu0 0
        %1624 = vmatpush1.bf16.msra.mxu0 %v1227
        %1625 = vmatprep.subr.bf16.mxu0 0
        %1626 = vmatpush1.bf16.msra.mxu0 %v1226
        %1627 = vmatprep.subr.bf16.mxu0 0
        %1628 = vmatpush1.bf16.msra.mxu0 %v1225
        %1629 = vmatprep.subr.bf16.mxu0 0
        %1630 = vmatpush1.bf16.msra.mxu0 %v1224
        %1631 = vmatprep.subr.bf16.mxu0 0
        %1632 = vmatpush1.bf16.msra.mxu0 %v1223
        %1633 = vmatprep.subr.bf16.mxu0 0
        %1634 = vmatpush1.bf16.msra.mxu0 %v1222
        %1635 = vmatprep.subr.bf16.mxu0 0
        %1636 = vmatpush1.bf16.msra.mxu0 %v1221
        %1637 = vmatprep.subr.bf16.mxu0 0
        %1638 = vmatpush2.bf16.msra.mxu0 %v1236
        %1639 = vmatprep.subr.bf16.mxu0 0
        %1640 = vmatpush2.bf16.msra.mxu0 %v1235
        %1641 = vmatprep.subr.bf16.mxu0 0
        %1642 = vmatpush2.bf16.msra.mxu0 %v1234
        %1643 = vmatprep.subr.bf16.mxu0 0
        %1644 = vmatpush2.bf16.msra.mxu0 %v1233
        %1645 = vmatprep.subr.bf16.mxu0 0
        %1646 = vmatpush2.bf16.msra.mxu0 %v1232
        %1647 = vmatprep.subr.bf16.mxu0 0
        %1648 = vmatpush2.bf16.msra.mxu0 %v1231
        %1649 = vmatprep.subr.bf16.mxu0 0
        %1650 = vmatpush2.bf16.msra.mxu0 %v1230
        %1651 = vmatprep.subr.bf16.mxu0 0
        %1652 = vmatpush2.bf16.msra.mxu0 %v1229
        %1653 = vmatprep.mubr.bf16.mxu0 %v592
        %1654 = vmatmul.mubr.bf16.gmra.mxu0 %v578
        %v1655 = vpop.f32.mrf.mxu0
        %v1656 = vadd.f32 %v1616, %v1655
        %v1657 = vpop.f32.mrf.mxu0
        %v1658 = vpop.f32.mrf.mxu0
        %v1659 = vpop.f32.mrf.mxu0
        %1660 = vdwg.mxu0
        %1661 = vmatprep.subr.bf16.mxu0 0
        %1662 = vmatpush1.bf16.msra.mxu0 %v1244
        %1663 = vmatprep.subr.bf16.mxu0 0
        %1664 = vmatpush1.bf16.msra.mxu0 %v1243
        %1665 = vmatprep.subr.bf16.mxu0 0
        %1666 = vmatpush1.bf16.msra.mxu0 %v1242
        %1667 = vmatprep.subr.bf16.mxu0 0
        %1668 = vmatpush1.bf16.msra.mxu0 %v1241
        %1669 = vmatprep.subr.bf16.mxu0 0
        %1670 = vmatpush1.bf16.msra.mxu0 %v1240
        %1671 = vmatprep.subr.bf16.mxu0 0
        %1672 = vmatpush1.bf16.msra.mxu0 %v1239
        %1673 = vmatprep.subr.bf16.mxu0 0
        %1674 = vmatpush1.bf16.msra.mxu0 %v1238
        %1675 = vmatprep.subr.bf16.mxu0 0
        %1676 = vmatpush1.bf16.msra.mxu0 %v1237
        %1677 = vmatprep.subr.bf16.mxu0 0
        %1678 = vmatpush2.bf16.msra.mxu0 %v1252
        %1679 = vmatprep.subr.bf16.mxu0 0
        %1680 = vmatpush2.bf16.msra.mxu0 %v1251
        %1681 = vmatprep.subr.bf16.mxu0 0
        %1682 = vmatpush2.bf16.msra.mxu0 %v1250
        %1683 = vmatprep.subr.bf16.mxu0 0
        %1684 = vmatpush2.bf16.msra.mxu0 %v1249
        %1685 = vmatprep.subr.bf16.mxu0 0
        %1686 = vmatpush2.bf16.msra.mxu0 %v1248
        %1687 = vmatprep.subr.bf16.mxu0 0
        %1688 = vmatpush2.bf16.msra.mxu0 %v1247
        %1689 = vmatprep.subr.bf16.mxu0 0
        %1690 = vmatpush2.bf16.msra.mxu0 %v1246
        %1691 = vmatprep.subr.bf16.mxu0 0
        %1692 = vmatpush2.bf16.msra.mxu0 %v1245
        %1693 = vmatprep.mubr.bf16.mxu0 %v596
        %1694 = vmatmul.mubr.bf16.gmra.mxu0 %v594
        %v1695 = vpop.f32.mrf.mxu0
        %v1696 = vadd.f32 %v1656, %v1695
        %v1697 = vpop.f32.mrf.mxu0
        %v1698 = vpop.f32.mrf.mxu0
        %v1699 = vpop.f32.mrf.mxu0
        %1700 = vdwg.mxu0
        %v1701 = vadd.f32 %v238, %v1696
        %1702 = vst [vmem:[#allocation2] sm:$0x3] %v1701
        %p1703 = scmp.eq.s32.totalorder %s17, 1
        // Predicated region
        $region45: #{forward.3} parent=39 // pred_check
          %p1704 = pneg %p1703
        $region46: #{forward.3} parent=39 // pred_check_branch
          %1706 = sbr.rel (%p1704) target = $region48
        $region47: #{forward.3} parent=39 // pred_region
          %v1707 = vld [vmem:[#allocation2] sm:$0x3]
          %v1708 = vld [vmem:[%s2] sm:$0x1]
          %v1710 = vlaneseq
          %v1711 = vshrl.u32 %v1710, 7
          %v1712 = vsub.s32 0, %v1711
          %v1713 = vrot.slane %v1708, %v1712
          %v1715 = vadd.f32 %v1707, %v1713
          %v1716 = vmax.f32 %v1715, 0.0
          %v1717 = vpack.c.bf16 %v1716, %v1716
          %v1718 = vld [vmem:[%s3] sm:$0xf]
          %v1719 = vld [vmem:[%s3 + $0x4] sm:$0xf]
          %v1720 = vld [vmem:[%s3 + $0x8] sm:$0xf]
          %v1721 = vld [vmem:[%s3 + $0xc] sm:$0xf]
          %v1722 = vld [vmem:[%s3 + $0x10] sm:$0xf]
          %v1723 = vld [vmem:[%s3 + $0x14] sm:$0xf]
          %v1724 = vld [vmem:[%s3 + $0x18] sm:$0xf]
          %v1725 = vld [vmem:[%s3 + $0x1c] sm:$0xf]
          %v1726 = vld [vmem:[%s3 + $0x20] sm:$0xf]
          %v1727 = vld [vmem:[%s3 + $0x24] sm:$0xf]
          %v1728 = vld [vmem:[%s3 + $0x28] sm:$0xf]
          %v1729 = vld [vmem:[%s3 + $0x2c] sm:$0xf]
          %v1730 = vld [vmem:[%s3 + $0x30] sm:$0xf]
          %v1731 = vld [vmem:[%s3 + $0x34] sm:$0xf]
          %v1732 = vld [vmem:[%s3 + $0x38] sm:$0xf]
          %v1733 = vld [vmem:[%s3 + $0x3c] sm:$0xf]
          %v1734 = vld [vmem:[%s4] sm:$0x1]
          %v1736 = vlaneseq
          %v1737 = vshrl.u32 %v1736, 7
          %v1738 = vsub.s32 0, %v1737
          %v1739 = vrot.slane %v1734, %v1738
          %v1757 = vunpack.c.l.b16 %v1718
          %v1758 = vunpack.c.l.b16 %v1719
          %v1759 = vunpack.c.l.b16 %v1720
          %v1760 = vunpack.c.l.b16 %v1721
          %v1761 = vunpack.c.l.b16 %v1722
          %v1762 = vunpack.c.l.b16 %v1723
          %v1763 = vunpack.c.l.b16 %v1724
          %v1764 = vunpack.c.l.b16 %v1725
          %v1765 = vunpack.c.l.b16 %v1726
          %v1766 = vunpack.c.l.b16 %v1727
          %v1767 = vunpack.c.l.b16 %v1728
          %v1768 = vunpack.c.l.b16 %v1729
          %v1769 = vunpack.c.l.b16 %v1730
          %v1770 = vunpack.c.l.b16 %v1731
          %v1771 = vunpack.c.l.b16 %v1732
          %v1772 = vunpack.c.l.b16 %v1733
          %v1773 = vpack.c.b16 %v1758, %v1757
          %v1774 = vpack.c.b16 %v1760, %v1759
          %v1775 = vpack.c.b16 %v1762, %v1761
          %v1776 = vpack.c.b16 %v1764, %v1763
          %v1777 = vpack.c.b16 %v1766, %v1765
          %v1778 = vpack.c.b16 %v1768, %v1767
          %v1779 = vpack.c.b16 %v1770, %v1769
          %v1780 = vpack.c.b16 %v1772, %v1771
          %1789 = vmatprep.subr.bf16.mxu0 0
          %1790 = vmatpush1.bf16.msra.mxu0 %v1780
          %1791 = vmatprep.subr.bf16.mxu0 0
          %1792 = vmatpush1.bf16.msra.mxu0 %v1779
          %1793 = vmatprep.subr.bf16.mxu0 0
          %1794 = vmatpush1.bf16.msra.mxu0 %v1778
          %1795 = vmatprep.subr.bf16.mxu0 0
          %1796 = vmatpush1.bf16.msra.mxu0 %v1777
          %1797 = vmatprep.subr.bf16.mxu0 0
          %1798 = vmatpush1.bf16.msra.mxu0 %v1776
          %1799 = vmatprep.subr.bf16.mxu0 0
          %1800 = vmatpush1.bf16.msra.mxu0 %v1775
          %1801 = vmatprep.subr.bf16.mxu0 0
          %1802 = vmatpush1.bf16.msra.mxu0 %v1774
          %1803 = vmatprep.subr.bf16.mxu0 0
          %1804 = vmatpush1.bf16.msra.mxu0 %v1773
          %1805 = vmatprep.subr.bf16.mxu0 0
          %1806 = vmatpush2.bf16.msra.mxu0 0
          %1807 = vmatprep.subr.bf16.mxu0 0
          %1808 = vmatpush2.bf16.msra.mxu0 0
          %1809 = vmatprep.subr.bf16.mxu0 0
          %1810 = vmatpush2.bf16.msra.mxu0 0
          %1811 = vmatprep.subr.bf16.mxu0 0
          %1812 = vmatpush2.bf16.msra.mxu0 0
          %1813 = vmatprep.subr.bf16.mxu0 0
          %1814 = vmatpush2.bf16.msra.mxu0 0
          %1815 = vmatprep.subr.bf16.mxu0 0
          %1816 = vmatpush2.bf16.msra.mxu0 0
          %1817 = vmatprep.subr.bf16.mxu0 0
          %1818 = vmatpush2.bf16.msra.mxu0 0
          %1819 = vmatprep.subr.bf16.mxu0 0
          %1820 = vmatpush2.bf16.msra.mxu0 0
          %1821 = vmatprep.mubr.bf16.mxu0 0
          %1822 = vmatmul.mubr.bf16.gmra.mxu0 %v1717
          %v1823 = vpop.f32.mrf.mxu0
          %v1824 = vadd.f32 %v1739, %v1823
          %v1825 = vpop.f32.mrf.mxu0
          %v1826 = vpop.f32.mrf.mxu0
          %v1827 = vpop.f32.mrf.mxu0
          %1828 = vdwg.mxu0
          %vm1829 = vcmask 58368
          %1830 = vst.msk [vmem:[#allocation3] sm:$0x3] %vm1829, %v1824
        $region48: #{forward.3} parent=39 // pred_fallthru
          _
        // Predicated region
        $region49: #{forward.3} parent=39 // pred_check
          %p1831 = pneg %p145
        $region50: #{forward.3} parent=39 // pred_check_branch
          %1833 = sbr.rel (%p1831) target = $region52
        $region51: #{forward.3} parent=39 // pred_region
          %s1835 = ssub.s32 32, 32
          %1836 = vsyncadd [#allocation4], %s1835
          %s1838 = sshll.u32 [#allocation3], 4
          %s1839 = int_to_ptr.vmem [resolvable:$true] %s1838
          %1841 = dma.vmem_to_hbm [thread:$0]  %s1839, 32, %s5, [#allocation4]
        $region52: #{forward.3} parent=39 // pred_fallthru
          _
        // Predicated region
        $region53: #{forward.3} parent=39 // pred_check
          %p1842 = pneg %p145
        $region54: #{forward.3} parent=39 // pred_check_branch
          %1844 = sbr.rel (%p1842) target = $region56
        $region55: #{forward.3} parent=39 // pred_region
          %1845 = dma.done [#allocation4], 32
        $region56: #{forward.3} parent=39 // pred_fallthru
          _
      $region40: #{forward.3} parent=5 // pred_fallthru
        _
      %p1846 = scmp.le.s32.totalorder 2, %s12
      // Predicated region
      $region57: #{forward.3} parent=5 // pred_check
        %p1847 = pneg %p1846
      $region58: #{forward.3} parent=5 // pred_check_branch
        %1849 = sbr.rel (%p1847) target = $region60
      $region59: #{forward.3} parent=5 // pred_region
        %s1850 = ssub.s32 %s12, 2
      $region60: #{forward.3} parent=5 // pred_fallthru
        _
    $region6: #{forward.3} parent=1 // loop_footer
      %s16 = sadd.s32 1, %s12
    $region7: #{forward.3} parent=1 // loop_footer_branch
      %11 = sbr.rel target = $region3
    $region8: #{forward.3} parent=1 // loop_exit
      _
    %1851 = vsyncpa [#allocation4], 1
    %s1852 = scalar_lea.sflag [#allocation4], 1
    %1853 = vsyncpa %s1852, 1

</llo_original>
